<compile_context>
chip_gen: v7x
topology: tpu7x:2x2x1
jax: 0.10.0
libtpu: 0.0.40
codegen_flags: <defaults>
</compile_context>

<pallas_src>
import jax
import jax.numpy as jnp
from jax import lax
from jax.experimental import pallas as pl
from jax.experimental.pallas import tpu as pltpu

HIDDEN_SIZE = 8
INPUT_SIZE = 10
NUM_LAYERS = 2
NUM_CLASSES = 5


# ------------------------------ fused Pallas kernel ------------------------------

def _bilstm_fused_kernel(x_ref, w_ref, o_ref):
    """Entire BiLSTM + fc in one kernel.

    x_ref: [T*B, 2H]  time-major input rows, zero-padded from input_size to 2H columns
    w_ref: [10H, 8H]  packed slab:
             rows [0,2H)   w_ih layer1 (input rows zero-padded to 2H)
             rows [2H,4H)  w_hh layer1 (block-diagonal fwd/rev)
             rows [4H,6H)  w_ih layer2
             rows [6H,8H)  w_hh layer2
             rows [8H,10H) w_fc (columns >= NUM_CLASSES zero)
             rows [10H,10H+8) biases: row0=b1, row1=b2, row2=b_fc (padded), rest zero
           gate columns are interleaved per-gate: [i_f i_r | f_f f_r | g_f g_r | o_f o_r]
    o_ref: [B, NUM_CLASSES]
    """
    B = o_ref.shape[0]
    TB = x_ref.shape[0]
    T = TB // B
    G = w_ref.shape[1]              # 8H (both directions, 4 gates)
    H = G // 8
    H2 = 2 * H

    # ---- masks / constants, built once ----
    lane = lax.broadcasted_iota(jnp.int32, (B, G), 1)
    fwd_cols = (lane % H2) < H                      # fwd-direction gate columns
    g_cols = (lane >= 4 * H) & (lane < 6 * H)       # 'g' (tanh) gate columns
    g_scale = jnp.where(g_cols, 2.0, 1.0).astype(jnp.float32)

    seq_fwd_cols = lax.broadcasted_iota(jnp.int32, (TB, H2), 1) < H
    half_fwd_cols = lax.broadcasted_iota(jnp.int32, (B, H2), 1) < H

    # ---- unpack the weight slab (static 8-row-aligned views, loaded once) ----
    w_ih1 = w_ref[0 * H2:1 * H2, :]
    w_hh1 = w_ref[1 * H2:2 * H2, :]
    w_ih2 = w_ref[2 * H2:3 * H2, :]
    w_hh2 = w_ref[3 * H2:4 * H2, :]
    w_fc = w_ref[4 * H2:5 * H2, :]
    b_blk = w_ref[5 * H2:5 * H2 + 8, :]
    b1 = b_blk[0:1, :]
    b2 = b_blk[1:2, :]
    b_fc = b_blk[2:3, :]

    def run_layer(x_flat, w_ih, w_hh, b):
        # Non-recurrent projection for BOTH directions, hoisted out of the time loop.
        proj = jnp.dot(x_flat, w_ih, preferred_element_type=jnp.float32) + b   # [T*B, 8H]
        # Combined fwd/rev per-step inputs (fwd consumes time s, rev consumes T-1-s),
        # built before the recurrence so the slices/select stay off the serial chain.
        p_steps = [
            jnp.where(fwd_cols,
                      proj[s * B:(s + 1) * B, :],
                      proj[(T - 1 - s) * B:(T - s) * B, :])
            for s in range(T)
        ]
        h = jnp.zeros((B, H2), jnp.float32)        # [h_fwd | h_rev]
        c = jnp.zeros((B, H2), jnp.float32)        # [c_fwd | c_rev]
        hs = []
        for s in range(T):                         # static unroll (T == 8)
            # single recurrent matmul per step (block-diagonal W_hh)
            gates = p_steps[s] + jnp.dot(h, w_hh, preferred_element_type=jnp.float32)
            # ONE EUP pass: tanh(x) == 2*sigmoid(2x) - 1 on the g columns.
            a = jax.nn.sigmoid(gates * g_scale)
            a = jnp.where(g_cols, 2.0 * a - 1.0, a)
            i_g = a[:, 0 * H2:1 * H2]
            f_g = a[:, 1 * H2:2 * H2]
            g_g = a[:, 2 * H2:3 * H2]
            o_g = a[:, 3 * H2:4 * H2]
            c = f_g * c + i_g * g_g
            h = o_g * jnp.tanh(c)
            hs.append(h)
        return hs

    # Layer 1 (input already zero-padded to 2H columns by the wrapper).
    hs1 = run_layer(x_ref[...], w_ih1, w_hh1, b1)

    # Assemble the layer-1 output sequence IN REGISTERS (no VMEM scratch):
    # seq[t] = [fwd(t) | rev(t)], fwd(t) from step t, rev(t) from step T-1-t.
    fwd_seq = jnp.concatenate(hs1, axis=0)          # [T*B, 2H]
    rev_seq = jnp.concatenate(hs1[::-1], axis=0)    # [T*B, 2H]
    seq = jnp.where(seq_fwd_cols, fwd_seq, rev_seq)

    # Layer 2: only the last-timestep features are needed.
    hs2 = run_layer(seq, w_ih2, w_hh2, b2)
    # out[:, -1, :] == [fwd(T-1) | rev(T-1)]; rev(T-1) is produced at packed step 0.
    last = jnp.where(half_fwd_cols, hs2[T - 1], hs2[0])            # [B, 2H]

    logits = jnp.dot(last, w_fc, preferred_element_type=jnp.float32) + b_fc   # [B, 8H]
    # Columns >= NUM_CLASSES of w_fc/b_fc are zero; store only the real classes.
    o_ref[...] = logits[:, :o_ref.shape[1]]


# ------------------------- one-time weight packing (host/init) -------------------------

def _interleave_gates(a_f, a_r, h):
    """[..., 4H] fwd + [..., 4H] rev -> [..., 8H] with per-gate (fwd, rev) interleave."""
    parts = []
    for k in range(4):                    # PyTorch gate order: i, f, g, o
        parts.append(a_f[..., k * h:(k + 1) * h])
        parts.append(a_r[..., k * h:(k + 1) * h])
    return jnp.concatenate(parts, axis=-1)


def _pack_layer(fwd, rev, h):
    w_ih_f, w_hh_f, b_f = fwd
    w_ih_r, w_hh_r, b_r = rev
    w_ih = _interleave_gates(w_ih_f, w_ih_r, h)                         # [Din, 8H]
    b = _interleave_gates(b_f, b_r, h)                                  # [1, 8H]
    w_hh_top = _interleave_gates(w_hh_f, jnp.zeros_like(w_hh_f), h)     # fwd hidden rows
    w_hh_bot = _interleave_gates(jnp.zeros_like(w_hh_r), w_hh_r, h)     # rev hidden rows
    w_hh = jnp.concatenate([w_hh_top, w_hh_bot], axis=0)                # [2H, 8H]
    return w_ih, w_hh, b


def pack_params(params):
    """Pack all weights into ONE [10H, 8H] slab. Call ONCE (outside the jitted forward)."""
    H = HIDDEN_SIZE
    G = 8 * H
    H2 = 2 * H
    w_ih1, w_hh1, b1 = _pack_layer(params["lstm"][0]["fwd"], params["lstm"][0]["rev"], H)
    w_ih2, w_hh2, b2 = _pack_layer(params["lstm"][1]["fwd"], params["lstm"][1]["rev"], H)
    w_fc, b_fc = params["fc"]
    din = w_ih1.shape[0]
    assert din <= H2, "layer-1 input width must fit in the 2H-row padded block"
    w_ih1p = jnp.zeros((H2, G), jnp.float32).at[:din, :].set(w_ih1)
    w_fcp = jnp.zeros((H2, G), jnp.float32).at[:, :NUM_CLASSES].set(w_fc)
    bias_blk = jnp.zeros((8, G), jnp.float32)
    bias_blk = bias_blk.at[0, :].set(b1[0])
    bias_blk = bias_blk.at[1, :].set(b2[0])
    bias_blk = bias_blk.at[2, :NUM_CLASSES].set(b_fc[0])
    slab = jnp.concatenate([w_ih1p, w_hh1, w_ih2, w_hh2, w_fcp, bias_blk], axis=0)
    return slab                                                         # [10H+8, 8H]


# -------------------------------------- wrapper --------------------------------------

@jax.jit
def bilstm_forward(x_btd, slab):
    """x_btd: [B, T, input_size] -> [B, 5]  (matches BiLSTM.forward, batch_first)."""
    B, T, d_in = x_btd.shape
    H = slab.shape[1] // 8
    # time-major rows, zero-padded to 2H columns (matches the padded w_ih1 block)
    x_flat = jnp.transpose(x_btd, (1, 0, 2)).reshape(T * B, d_in)
    x_pad = jnp.pad(x_flat, ((0, 0), (0, 2 * H - d_in)))
    return pl.pallas_call(
        _bilstm_fused_kernel,
        out_shape=jax.ShapeDtypeStruct((B, NUM_CLASSES), jnp.float32),
        in_specs=[pl.BlockSpec(memory_space=pltpu.MemorySpace.VMEM),
                  pl.BlockSpec(memory_space=pltpu.MemorySpace.VMEM)],
        out_specs=pl.BlockSpec(memory_space=pltpu.MemorySpace.VMEM),
    )(x_pad, slab)


# -------------------------- deterministic parameters ------------------------------

def _uniform(key, shape, bound):
    return jax.random.uniform(key, shape, jnp.float32, -bound, bound)


def init_params(key):
    bound = 1.0 / (HIDDEN_SIZE ** 0.5)
    layers = []
    din = INPUT_SIZE
    for _ in range(NUM_LAYERS):
        layer = {}
        for name in ("fwd", "rev"):
            key, k1, k2, k3, k4 = jax.random.split(key, 5)
            w_ih = _uniform(k1, (din, 4 * HIDDEN_SIZE), bound)          # torch weight_ih^T
            w_hh = _uniform(k2, (HIDDEN_SIZE, 4 * HIDDEN_SIZE), bound)  # torch weight_hh^T
            b = (_uniform(k3, (1, 4 * HIDDEN_SIZE), bound)
                 + _uniform(k4, (1, 4 * HIDDEN_SIZE), bound))           # b_ih + b_hh
            layer[name] = (w_ih, w_hh, b)
        layers.append(layer)
        din = 2 * HIDDEN_SIZE
    key, kf1, kf2 = jax.random.split(key, 3)
    fc_bound = 1.0 / ((2 * HIDDEN_SIZE) ** 0.5)
    w_fc = _uniform(kf1, (2 * HIDDEN_SIZE, NUM_CLASSES), fc_bound)      # torch fc.weight^T
    b_fc = _uniform(kf2, (1, NUM_CLASSES), fc_bound)
    return {"lstm": layers, "fc": (w_fc, b_fc)}


# ------------------------------ pure-JAX reference --------------------------------

def _lstm_dir_ref(x_tbd, w_ih, w_hh, b):
    H = w_hh.shape[0]
    B = x_tbd.shape[1]

    def step(carry, x_t):
        h, c = carry
        gates = jnp.dot(x_t, w_ih) + jnp.dot(h, w_hh) + b
        i = jax.nn.sigmoid(gates[:, :H])
        f = jax.nn.sigmoid(gates[:, H:2 * H])
        g = jnp.tanh(gates[:, 2 * H:3 * H])
        o = jax.nn.sigmoid(gates[:, 3 * H:])
        c = f * c + i * g
        h = o * jnp.tanh(c)
        return (h, c), h

    init = (jnp.zeros((B, H), jnp.float32), jnp.zeros((B, H), jnp.float32))
    _, hs = lax.scan(step, init, x_tbd)
    return hs


def bilstm_ref(x_btd, params):
    x = jnp.transpose(x_btd, (1, 0, 2))
    for layer in params["lstm"]:
        h_fwd = _lstm_dir_ref(x, *layer["fwd"])
        h_rev = _lstm_dir_ref(x[::-1], *layer["rev"])[::-1]
        x = jnp.concatenate([h_fwd, h_rev], axis=-1)
    last = x[-1]
    w_fc, b_fc = params["fc"]
    return jnp.dot(last, w_fc) + b_fc


# ----------------------------------- main ------------------------------------------

if __name__ == "__main__":
    B, T = 2, 8
    key = jax.random.PRNGKey(0)
    k_x, k_p = jax.random.split(key)
    x = jax.random.normal(k_x, (B, T, INPUT_SIZE), dtype=jnp.float32)

    params = init_params(k_p)
    slab = jax.block_until_ready(pack_params(params))   # one-time packing, outside jit'd fwd

    out = bilstm_forward(x, slab)
    out = jax.block_until_ready(out)

    ref = bilstm_ref(x, params)
    assert out.shape == (B, NUM_CLASSES), out.shape
    # Default (non-HIGHEST) MXU precision rounds matmul operands toward bf16 level vs the
    # XLA f32 reference; tolerance leaves headroom for that (semantic bugs would show up
    # as O(0.1..1) discrepancies).
    assert jnp.allclose(out, ref, atol=2e-2, rtol=2e-2), (out, ref)

    print("KERNEL_OK")
</pallas_src>

<mosaic_0001>
module attributes {stable_mosaic.version = 11 : i64} {
  func.func @_bilstm_fused_kernel(%arg0: memref<16x16xf32, #tpu.memory_space<vmem>>, %arg1: memref<88x64xf32, #tpu.memory_space<vmem>>, %arg2: memref<2x5xf32, #tpu.memory_space<vmem>>) attributes {dimension_semantics = [], scalar_prefetch = 0 : i64, scratch_operands = 0 : i64, tpu.core_type = #tpu.core_type<tc>} {
    %0 = tpu.iota {dimensions = array<i32: 1>} : vector<2x64xi32>
    %c16_i32 = arith.constant 16 : i32
    %c0_i32 = arith.constant 0 : i32
    %1 = arith.cmpi eq, %c16_i32, %c0_i32 : i32
    %c1_i32 = arith.constant 1 : i32
    %2 = arith.select %1, %c1_i32, %c16_i32 : i32
    %3 = vector.broadcast %2 : i32 to vector<2x64xi32>
    %4 = arith.remsi %0, %3 : vector<2x64xi32>
    %c0_i32_0 = arith.constant 0 : i32
    %5 = vector.broadcast %c0_i32_0 : i32 to vector<2x64xi32>
    %6 = arith.cmpi ne, %4, %5 : vector<2x64xi32>
    %c0_i32_1 = arith.constant 0 : i32
    %7 = vector.broadcast %c0_i32_1 : i32 to vector<2x64xi32>
    %8 = arith.cmpi slt, %4, %7 : vector<2x64xi32>
    %c0_i32_2 = arith.constant 0 : i32
    %9 = arith.cmpi slt, %2, %c0_i32_2 : i32
    %10 = vector.broadcast %9 : i1 to vector<2x64xi1>
    %11 = vector.broadcast %10 : vector<2x64xi1> to vector<2x64xi1>
    %12 = arith.xori %8, %11 : vector<2x64xi1>
    %13 = arith.andi %12, %6 : vector<2x64xi1>
    %14 = vector.broadcast %2 : i32 to vector<2x64xi32>
    %15 = arith.addi %4, %14 : vector<2x64xi32>
    %16 = arith.select %13, %15, %4 : vector<2x64xi1>, vector<2x64xi32>
    %c8_i32 = arith.constant 8 : i32
    %17 = vector.broadcast %c8_i32 : i32 to vector<2x64xi32>
    %18 = arith.cmpi slt, %16, %17 : vector<2x64xi32>
    %c32_i32 = arith.constant 32 : i32
    %19 = vector.broadcast %c32_i32 : i32 to vector<2x64xi32>
    %20 = arith.cmpi sge, %0, %19 : vector<2x64xi32>
    %c48_i32 = arith.constant 48 : i32
    %21 = vector.broadcast %c48_i32 : i32 to vector<2x64xi32>
    %22 = arith.cmpi slt, %0, %21 : vector<2x64xi32>
    %23 = arith.andi %20, %22 : vector<2x64xi1>
    %cst = arith.constant 2.000000e+00 : f32
    %cst_3 = arith.constant 1.000000e+00 : f32
    %24 = vector.broadcast %cst : f32 to vector<2x64xf32>
    %25 = vector.broadcast %cst_3 : f32 to vector<2x64xf32>
    %26 = arith.select %23, %24, %25 : vector<2x64xi1>, vector<2x64xf32>
    %27 = tpu.iota {dimensions = array<i32: 1>} : vector<16x16xi32>
    %c8_i32_4 = arith.constant 8 : i32
    %28 = vector.broadcast %c8_i32_4 : i32 to vector<16x16xi32>
    %29 = arith.cmpi slt, %27, %28 : vector<16x16xi32>
    %30 = tpu.iota {dimensions = array<i32: 1>} : vector<2x16xi32>
    %c8_i32_5 = arith.constant 8 : i32
    %31 = vector.broadcast %c8_i32_5 : i32 to vector<2x16xi32>
    %32 = arith.cmpi slt, %30, %31 : vector<2x16xi32>
    %c0 = arith.constant 0 : index
    %c0_6 = arith.constant 0 : index
    %33 = vector.load %arg1[%c0, %c0_6] : memref<88x64xf32, #tpu.memory_space<vmem>>, vector<16x64xf32>
    %c16 = arith.constant 16 : index
    %c0_7 = arith.constant 0 : index
    %34 = vector.load %arg1[%c16, %c0_7] : memref<88x64xf32, #tpu.memory_space<vmem>>, vector<16x64xf32>
    %c32 = arith.constant 32 : index
    %c0_8 = arith.constant 0 : index
    %35 = vector.load %arg1[%c32, %c0_8] : memref<88x64xf32, #tpu.memory_space<vmem>>, vector<16x64xf32>
    %c48 = arith.constant 48 : index
    %c0_9 = arith.constant 0 : index
    %36 = vector.load %arg1[%c48, %c0_9] : memref<88x64xf32, #tpu.memory_space<vmem>>, vector<16x64xf32>
    %c64 = arith.constant 64 : index
    %c0_10 = arith.constant 0 : index
    %37 = vector.load %arg1[%c64, %c0_10] : memref<88x64xf32, #tpu.memory_space<vmem>>, vector<16x64xf32>
    %c80 = arith.constant 80 : index
    %c0_11 = arith.constant 0 : index
    %38 = vector.load %arg1[%c80, %c0_11] : memref<88x64xf32, #tpu.memory_space<vmem>>, vector<8x64xf32>
    %39 = vector.extract_strided_slice %38 {offsets = [0, 0], sizes = [1, 64], strides = [1, 1]} : vector<8x64xf32> to vector<1x64xf32>
    %40 = vector.extract_strided_slice %38 {offsets = [1, 0], sizes = [1, 64], strides = [1, 1]} : vector<8x64xf32> to vector<1x64xf32>
    %41 = vector.extract_strided_slice %38 {offsets = [2, 0], sizes = [1, 64], strides = [1, 1]} : vector<8x64xf32> to vector<1x64xf32>
    %c0_12 = arith.constant 0 : index
    %c0_13 = arith.constant 0 : index
    %42 = vector.load %arg0[%c0_12, %c0_13] : memref<16x16xf32, #tpu.memory_space<vmem>>, vector<16x16xf32>
    %cst_14 = arith.constant dense<0.000000e+00> : vector<16x64xf32>
    %43 = tpu.matmul %42, %33, %cst_14 {dimension_numbers = #tpu.dot_dimension_numbers<[1], [0], [0], [1], [0, 0, 1, 1], [], []>} : vector<16x16xf32>, vector<16x64xf32>, vector<16x64xf32> -> vector<16x64xf32>
    %44 = vector.broadcast %39 : vector<1x64xf32> to vector<16x64xf32>
    %45 = arith.addf %43, %44 : vector<16x64xf32>
    %46 = vector.extract_strided_slice %45 {offsets = [0, 0], sizes = [2, 64], strides = [1, 1]} : vector<16x64xf32> to vector<2x64xf32>
    %47 = vector.extract_strided_slice %45 {offsets = [14, 0], sizes = [2, 64], strides = [1, 1]} : vector<16x64xf32> to vector<2x64xf32>
    %48 = arith.select %18, %46, %47 : vector<2x64xi1>, vector<2x64xf32>
    %49 = vector.extract_strided_slice %45 {offsets = [2, 0], sizes = [2, 64], strides = [1, 1]} : vector<16x64xf32> to vector<2x64xf32>
    %50 = vector.extract_strided_slice %45 {offsets = [12, 0], sizes = [2, 64], strides = [1, 1]} : vector<16x64xf32> to vector<2x64xf32>
    %51 = arith.select %18, %49, %50 : vector<2x64xi1>, vector<2x64xf32>
    %52 = vector.extract_strided_slice %45 {offsets = [4, 0], sizes = [2, 64], strides = [1, 1]} : vector<16x64xf32> to vector<2x64xf32>
    %53 = vector.extract_strided_slice %45 {offsets = [10, 0], sizes = [2, 64], strides = [1, 1]} : vector<16x64xf32> to vector<2x64xf32>
    %54 = arith.select %18, %52, %53 : vector<2x64xi1>, vector<2x64xf32>
    %55 = vector.extract_strided_slice %45 {offsets = [6, 0], sizes = [2, 64], strides = [1, 1]} : vector<16x64xf32> to vector<2x64xf32>
    %56 = vector.extract_strided_slice %45 {offsets = [8, 0], sizes = [2, 64], strides = [1, 1]} : vector<16x64xf32> to vector<2x64xf32>
    %57 = arith.select %18, %55, %56 : vector<2x64xi1>, vector<2x64xf32>
    %58 = vector.extract_strided_slice %45 {offsets = [8, 0], sizes = [2, 64], strides = [1, 1]} : vector<16x64xf32> to vector<2x64xf32>
    %59 = vector.extract_strided_slice %45 {offsets = [6, 0], sizes = [2, 64], strides = [1, 1]} : vector<16x64xf32> to vector<2x64xf32>
    %60 = arith.select %18, %58, %59 : vector<2x64xi1>, vector<2x64xf32>
    %61 = vector.extract_strided_slice %45 {offsets = [10, 0], sizes = [2, 64], strides = [1, 1]} : vector<16x64xf32> to vector<2x64xf32>
    %62 = vector.extract_strided_slice %45 {offsets = [4, 0], sizes = [2, 64], strides = [1, 1]} : vector<16x64xf32> to vector<2x64xf32>
    %63 = arith.select %18, %61, %62 : vector<2x64xi1>, vector<2x64xf32>
    %64 = vector.extract_strided_slice %45 {offsets = [12, 0], sizes = [2, 64], strides = [1, 1]} : vector<16x64xf32> to vector<2x64xf32>
    %65 = vector.extract_strided_slice %45 {offsets = [2, 0], sizes = [2, 64], strides = [1, 1]} : vector<16x64xf32> to vector<2x64xf32>
    %66 = arith.select %18, %64, %65 : vector<2x64xi1>, vector<2x64xf32>
    %67 = vector.extract_strided_slice %45 {offsets = [14, 0], sizes = [2, 64], strides = [1, 1]} : vector<16x64xf32> to vector<2x64xf32>
    %68 = vector.extract_strided_slice %45 {offsets = [0, 0], sizes = [2, 64], strides = [1, 1]} : vector<16x64xf32> to vector<2x64xf32>
    %69 = arith.select %18, %67, %68 : vector<2x64xi1>, vector<2x64xf32>
    %cst_15 = arith.constant 0.000000e+00 : f32
    %70 = vector.broadcast %cst_15 : f32 to vector<2x16xf32>
    %cst_16 = arith.constant 0.000000e+00 : f32
    %71 = vector.broadcast %cst_16 : f32 to vector<2x16xf32>
    %cst_17 = arith.constant dense<0.000000e+00> : vector<2x64xf32>
    %72 = tpu.matmul %70, %34, %cst_17 {dimension_numbers = #tpu.dot_dimension_numbers<[1], [0], [0], [1], [0, 0, 1, 1], [], []>} : vector<2x16xf32>, vector<16x64xf32>, vector<2x64xf32> -> vector<2x64xf32>
    %73 = arith.addf %48, %72 : vector<2x64xf32>
    %74 = arith.mulf %73, %26 : vector<2x64xf32>
    %75 = arith.negf %74 : vector<2x64xf32>
    %76 = math.exp %75 : vector<2x64xf32>
    %cst_18 = arith.constant 1.000000e+00 : f32
    %77 = vector.broadcast %cst_18 : f32 to vector<2x64xf32>
    %78 = arith.addf %77, %76 : vector<2x64xf32>
    %79 = arith.divf %77, %78 : vector<2x64xf32>
    %cst_19 = arith.constant 2.000000e+00 : f32
    %80 = vector.broadcast %cst_19 : f32 to vector<2x64xf32>
    %81 = arith.mulf %80, %79 : vector<2x64xf32>
    %cst_20 = arith.constant 1.000000e+00 : f32
    %82 = vector.broadcast %cst_20 : f32 to vector<2x64xf32>
    %83 = arith.subf %81, %82 : vector<2x64xf32>
    %84 = arith.select %23, %83, %79 : vector<2x64xi1>, vector<2x64xf32>
    %85 = vector.extract_strided_slice %84 {offsets = [0, 0], sizes = [2, 16], strides = [1, 1]} : vector<2x64xf32> to vector<2x16xf32>
    %86 = vector.extract_strided_slice %84 {offsets = [0, 16], sizes = [2, 16], strides = [1, 1]} : vector<2x64xf32> to vector<2x16xf32>
    %87 = vector.extract_strided_slice %84 {offsets = [0, 32], sizes = [2, 16], strides = [1, 1]} : vector<2x64xf32> to vector<2x16xf32>
    %88 = vector.extract_strided_slice %84 {offsets = [0, 48], sizes = [2, 16], strides = [1, 1]} : vector<2x64xf32> to vector<2x16xf32>
    %89 = arith.mulf %86, %71 : vector<2x16xf32>
    %90 = arith.mulf %85, %87 : vector<2x16xf32>
    %91 = arith.addf %89, %90 : vector<2x16xf32>
    %92 = math.tanh %91 : vector<2x16xf32>
    %93 = arith.mulf %88, %92 : vector<2x16xf32>
    %cst_21 = arith.constant dense<0.000000e+00> : vector<2x64xf32>
    %94 = tpu.matmul %93, %34, %cst_21 {dimension_numbers = #tpu.dot_dimension_numbers<[1], [0], [0], [1], [0, 0, 1, 1], [], []>} : vector<2x16xf32>, vector<16x64xf32>, vector<2x64xf32> -> vector<2x64xf32>
    %95 = arith.addf %51, %94 : vector<2x64xf32>
    %96 = arith.mulf %95, %26 : vector<2x64xf32>
    %97 = arith.negf %96 : vector<2x64xf32>
    %98 = math.exp %97 : vector<2x64xf32>
    %cst_22 = arith.constant 1.000000e+00 : f32
    %99 = vector.broadcast %cst_22 : f32 to vector<2x64xf32>
    %100 = arith.addf %99, %98 : vector<2x64xf32>
    %101 = arith.divf %99, %100 : vector<2x64xf32>
    %cst_23 = arith.constant 2.000000e+00 : f32
    %102 = vector.broadcast %cst_23 : f32 to vector<2x64xf32>
    %103 = arith.mulf %102, %101 : vector<2x64xf32>
    %cst_24 = arith.constant 1.000000e+00 : f32
    %104 = vector.broadcast %cst_24 : f32 to vector<2x64xf32>
    %105 = arith.subf %103, %104 : vector<2x64xf32>
    %106 = arith.select %23, %105, %101 : vector<2x64xi1>, vector<2x64xf32>
    %107 = vector.extract_strided_slice %106 {offsets = [0, 0], sizes = [2, 16], strides = [1, 1]} : vector<2x64xf32> to vector<2x16xf32>
    %108 = vector.extract_strided_slice %106 {offsets = [0, 16], sizes = [2, 16], strides = [1, 1]} : vector<2x64xf32> to vector<2x16xf32>
    %109 = vector.extract_strided_slice %106 {offsets = [0, 32], sizes = [2, 16], strides = [1, 1]} : vector<2x64xf32> to vector<2x16xf32>
    %110 = vector.extract_strided_slice %106 {offsets = [0, 48], sizes = [2, 16], strides = [1, 1]} : vector<2x64xf32> to vector<2x16xf32>
    %111 = arith.mulf %108, %91 : vector<2x16xf32>
    %112 = arith.mulf %107, %109 : vector<2x16xf32>
    %113 = arith.addf %111, %112 : vector<2x16xf32>
    %114 = math.tanh %113 : vector<2x16xf32>
    %115 = arith.mulf %110, %114 : vector<2x16xf32>
    %cst_25 = arith.constant dense<0.000000e+00> : vector<2x64xf32>
    %116 = tpu.matmul %115, %34, %cst_25 {dimension_numbers = #tpu.dot_dimension_numbers<[1], [0], [0], [1], [0, 0, 1, 1], [], []>} : vector<2x16xf32>, vector<16x64xf32>, vector<2x64xf32> -> vector<2x64xf32>
    %117 = arith.addf %54, %116 : vector<2x64xf32>
    %118 = arith.mulf %117, %26 : vector<2x64xf32>
    %119 = arith.negf %118 : vector<2x64xf32>
    %120 = math.exp %119 : vector<2x64xf32>
    %cst_26 = arith.constant 1.000000e+00 : f32
    %121 = vector.broadcast %cst_26 : f32 to vector<2x64xf32>
    %122 = arith.addf %121, %120 : vector<2x64xf32>
    %123 = arith.divf %121, %122 : vector<2x64xf32>
    %cst_27 = arith.constant 2.000000e+00 : f32
    %124 = vector.broadcast %cst_27 : f32 to vector<2x64xf32>
    %125 = arith.mulf %124, %123 : vector<2x64xf32>
    %cst_28 = arith.constant 1.000000e+00 : f32
    %126 = vector.broadcast %cst_28 : f32 to vector<2x64xf32>
    %127 = arith.subf %125, %126 : vector<2x64xf32>
    %128 = arith.select %23, %127, %123 : vector<2x64xi1>, vector<2x64xf32>
    %129 = vector.extract_strided_slice %128 {offsets = [0, 0], sizes = [2, 16], strides = [1, 1]} : vector<2x64xf32> to vector<2x16xf32>
    %130 = vector.extract_strided_slice %128 {offsets = [0, 16], sizes = [2, 16], strides = [1, 1]} : vector<2x64xf32> to vector<2x16xf32>
    %131 = vector.extract_strided_slice %128 {offsets = [0, 32], sizes = [2, 16], strides = [1, 1]} : vector<2x64xf32> to vector<2x16xf32>
    %132 = vector.extract_strided_slice %128 {offsets = [0, 48], sizes = [2, 16], strides = [1, 1]} : vector<2x64xf32> to vector<2x16xf32>
    %133 = arith.mulf %130, %113 : vector<2x16xf32>
    %134 = arith.mulf %129, %131 : vector<2x16xf32>
    %135 = arith.addf %133, %134 : vector<2x16xf32>
    %136 = math.tanh %135 : vector<2x16xf32>
    %137 = arith.mulf %132, %136 : vector<2x16xf32>
    %cst_29 = arith.constant dense<0.000000e+00> : vector<2x64xf32>
    %138 = tpu.matmul %137, %34, %cst_29 {dimension_numbers = #tpu.dot_dimension_numbers<[1], [0], [0], [1], [0, 0, 1, 1], [], []>} : vector<2x16xf32>, vector<16x64xf32>, vector<2x64xf32> -> vector<2x64xf32>
    %139 = arith.addf %57, %138 : vector<2x64xf32>
    %140 = arith.mulf %139, %26 : vector<2x64xf32>
    %141 = arith.negf %140 : vector<2x64xf32>
    %142 = math.exp %141 : vector<2x64xf32>
    %cst_30 = arith.constant 1.000000e+00 : f32
    %143 = vector.broadcast %cst_30 : f32 to vector<2x64xf32>
    %144 = arith.addf %143, %142 : vector<2x64xf32>
    %145 = arith.divf %143, %144 : vector<2x64xf32>
    %cst_31 = arith.constant 2.000000e+00 : f32
    %146 = vector.broadcast %cst_31 : f32 to vector<2x64xf32>
    %147 = arith.mulf %146, %145 : vector<2x64xf32>
    %cst_32 = arith.constant 1.000000e+00 : f32
    %148 = vector.broadcast %cst_32 : f32 to vector<2x64xf32>
    %149 = arith.subf %147, %148 : vector<2x64xf32>
    %150 = arith.select %23, %149, %145 : vector<2x64xi1>, vector<2x64xf32>
    %151 = vector.extract_strided_slice %150 {offsets = [0, 0], sizes = [2, 16], strides = [1, 1]} : vector<2x64xf32> to vector<2x16xf32>
    %152 = vector.extract_strided_slice %150 {offsets = [0, 16], sizes = [2, 16], strides = [1, 1]} : vector<2x64xf32> to vector<2x16xf32>
    %153 = vector.extract_strided_slice %150 {offsets = [0, 32], sizes = [2, 16], strides = [1, 1]} : vector<2x64xf32> to vector<2x16xf32>
    %154 = vector.extract_strided_slice %150 {offsets = [0, 48], sizes = [2, 16], strides = [1, 1]} : vector<2x64xf32> to vector<2x16xf32>
    %155 = arith.mulf %152, %135 : vector<2x16xf32>
    %156 = arith.mulf %151, %153 : vector<2x16xf32>
    %157 = arith.addf %155, %156 : vector<2x16xf32>
    %158 = math.tanh %157 : vector<2x16xf32>
    %159 = arith.mulf %154, %158 : vector<2x16xf32>
    %cst_33 = arith.constant dense<0.000000e+00> : vector<2x64xf32>
    %160 = tpu.matmul %159, %34, %cst_33 {dimension_numbers = #tpu.dot_dimension_numbers<[1], [0], [0], [1], [0, 0, 1, 1], [], []>} : vector<2x16xf32>, vector<16x64xf32>, vector<2x64xf32> -> vector<2x64xf32>
    %161 = arith.addf %60, %160 : vector<2x64xf32>
    %162 = arith.mulf %161, %26 : vector<2x64xf32>
    %163 = arith.negf %162 : vector<2x64xf32>
    %164 = math.exp %163 : vector<2x64xf32>
    %cst_34 = arith.constant 1.000000e+00 : f32
    %165 = vector.broadcast %cst_34 : f32 to vector<2x64xf32>
    %166 = arith.addf %165, %164 : vector<2x64xf32>
    %167 = arith.divf %165, %166 : vector<2x64xf32>
    %cst_35 = arith.constant 2.000000e+00 : f32
    %168 = vector.broadcast %cst_35 : f32 to vector<2x64xf32>
    %169 = arith.mulf %168, %167 : vector<2x64xf32>
    %cst_36 = arith.constant 1.000000e+00 : f32
    %170 = vector.broadcast %cst_36 : f32 to vector<2x64xf32>
    %171 = arith.subf %169, %170 : vector<2x64xf32>
    %172 = arith.select %23, %171, %167 : vector<2x64xi1>, vector<2x64xf32>
    %173 = vector.extract_strided_slice %172 {offsets = [0, 0], sizes = [2, 16], strides = [1, 1]} : vector<2x64xf32> to vector<2x16xf32>
    %174 = vector.extract_strided_slice %172 {offsets = [0, 16], sizes = [2, 16], strides = [1, 1]} : vector<2x64xf32> to vector<2x16xf32>
    %175 = vector.extract_strided_slice %172 {offsets = [0, 32], sizes = [2, 16], strides = [1, 1]} : vector<2x64xf32> to vector<2x16xf32>
    %176 = vector.extract_strided_slice %172 {offsets = [0, 48], sizes = [2, 16], strides = [1, 1]} : vector<2x64xf32> to vector<2x16xf32>
    %177 = arith.mulf %174, %157 : vector<2x16xf32>
    %178 = arith.mulf %173, %175 : vector<2x16xf32>
    %179 = arith.addf %177, %178 : vector<2x16xf32>
    %180 = math.tanh %179 : vector<2x16xf32>
    %181 = arith.mulf %176, %180 : vector<2x16xf32>
    %cst_37 = arith.constant dense<0.000000e+00> : vector<2x64xf32>
    %182 = tpu.matmul %181, %34, %cst_37 {dimension_numbers = #tpu.dot_dimension_numbers<[1], [0], [0], [1], [0, 0, 1, 1], [], []>} : vector<2x16xf32>, vector<16x64xf32>, vector<2x64xf32> -> vector<2x64xf32>
    %183 = arith.addf %63, %182 : vector<2x64xf32>
    %184 = arith.mulf %183, %26 : vector<2x64xf32>
    %185 = arith.negf %184 : vector<2x64xf32>
    %186 = math.exp %185 : vector<2x64xf32>
    %cst_38 = arith.constant 1.000000e+00 : f32
    %187 = vector.broadcast %cst_38 : f32 to vector<2x64xf32>
    %188 = arith.addf %187, %186 : vector<2x64xf32>
    %189 = arith.divf %187, %188 : vector<2x64xf32>
    %cst_39 = arith.constant 2.000000e+00 : f32
    %190 = vector.broadcast %cst_39 : f32 to vector<2x64xf32>
    %191 = arith.mulf %190, %189 : vector<2x64xf32>
    %cst_40 = arith.constant 1.000000e+00 : f32
    %192 = vector.broadcast %cst_40 : f32 to vector<2x64xf32>
    %193 = arith.subf %191, %192 : vector<2x64xf32>
    %194 = arith.select %23, %193, %189 : vector<2x64xi1>, vector<2x64xf32>
    %195 = vector.extract_strided_slice %194 {offsets = [0, 0], sizes = [2, 16], strides = [1, 1]} : vector<2x64xf32> to vector<2x16xf32>
    %196 = vector.extract_strided_slice %194 {offsets = [0, 16], sizes = [2, 16], strides = [1, 1]} : vector<2x64xf32> to vector<2x16xf32>
    %197 = vector.extract_strided_slice %194 {offsets = [0, 32], sizes = [2, 16], strides = [1, 1]} : vector<2x64xf32> to vector<2x16xf32>
    %198 = vector.extract_strided_slice %194 {offsets = [0, 48], sizes = [2, 16], strides = [1, 1]} : vector<2x64xf32> to vector<2x16xf32>
    %199 = arith.mulf %196, %179 : vector<2x16xf32>
    %200 = arith.mulf %195, %197 : vector<2x16xf32>
    %201 = arith.addf %199, %200 : vector<2x16xf32>
    %202 = math.tanh %201 : vector<2x16xf32>
    %203 = arith.mulf %198, %202 : vector<2x16xf32>
    %cst_41 = arith.constant dense<0.000000e+00> : vector<2x64xf32>
    %204 = tpu.matmul %203, %34, %cst_41 {dimension_numbers = #tpu.dot_dimension_numbers<[1], [0], [0], [1], [0, 0, 1, 1], [], []>} : vector<2x16xf32>, vector<16x64xf32>, vector<2x64xf32> -> vector<2x64xf32>
    %205 = arith.addf %66, %204 : vector<2x64xf32>
    %206 = arith.mulf %205, %26 : vector<2x64xf32>
    %207 = arith.negf %206 : vector<2x64xf32>
    %208 = math.exp %207 : vector<2x64xf32>
    %cst_42 = arith.constant 1.000000e+00 : f32
    %209 = vector.broadcast %cst_42 : f32 to vector<2x64xf32>
    %210 = arith.addf %209, %208 : vector<2x64xf32>
    %211 = arith.divf %209, %210 : vector<2x64xf32>
    %cst_43 = arith.constant 2.000000e+00 : f32
    %212 = vector.broadcast %cst_43 : f32 to vector<2x64xf32>
    %213 = arith.mulf %212, %211 : vector<2x64xf32>
    %cst_44 = arith.constant 1.000000e+00 : f32
    %214 = vector.broadcast %cst_44 : f32 to vector<2x64xf32>
    %215 = arith.subf %213, %214 : vector<2x64xf32>
    %216 = arith.select %23, %215, %211 : vector<2x64xi1>, vector<2x64xf32>
    %217 = vector.extract_strided_slice %216 {offsets = [0, 0], sizes = [2, 16], strides = [1, 1]} : vector<2x64xf32> to vector<2x16xf32>
    %218 = vector.extract_strided_slice %216 {offsets = [0, 16], sizes = [2, 16], strides = [1, 1]} : vector<2x64xf32> to vector<2x16xf32>
    %219 = vector.extract_strided_slice %216 {offsets = [0, 32], sizes = [2, 16], strides = [1, 1]} : vector<2x64xf32> to vector<2x16xf32>
    %220 = vector.extract_strided_slice %216 {offsets = [0, 48], sizes = [2, 16], strides = [1, 1]} : vector<2x64xf32> to vector<2x16xf32>
    %221 = arith.mulf %218, %201 : vector<2x16xf32>
    %222 = arith.mulf %217, %219 : vector<2x16xf32>
    %223 = arith.addf %221, %222 : vector<2x16xf32>
    %224 = math.tanh %223 : vector<2x16xf32>
    %225 = arith.mulf %220, %224 : vector<2x16xf32>
    %cst_45 = arith.constant dense<0.000000e+00> : vector<2x64xf32>
    %226 = tpu.matmul %225, %34, %cst_45 {dimension_numbers = #tpu.dot_dimension_numbers<[1], [0], [0], [1], [0, 0, 1, 1], [], []>} : vector<2x16xf32>, vector<16x64xf32>, vector<2x64xf32> -> vector<2x64xf32>
    %227 = arith.addf %69, %226 : vector<2x64xf32>
    %228 = arith.mulf %227, %26 : vector<2x64xf32>
    %229 = arith.negf %228 : vector<2x64xf32>
    %230 = math.exp %229 : vector<2x64xf32>
    %cst_46 = arith.constant 1.000000e+00 : f32
    %231 = vector.broadcast %cst_46 : f32 to vector<2x64xf32>
    %232 = arith.addf %231, %230 : vector<2x64xf32>
    %233 = arith.divf %231, %232 : vector<2x64xf32>
    %cst_47 = arith.constant 2.000000e+00 : f32
    %234 = vector.broadcast %cst_47 : f32 to vector<2x64xf32>
    %235 = arith.mulf %234, %233 : vector<2x64xf32>
    %cst_48 = arith.constant 1.000000e+00 : f32
    %236 = vector.broadcast %cst_48 : f32 to vector<2x64xf32>
    %237 = arith.subf %235, %236 : vector<2x64xf32>
    %238 = arith.select %23, %237, %233 : vector<2x64xi1>, vector<2x64xf32>
    %239 = vector.extract_strided_slice %238 {offsets = [0, 0], sizes = [2, 16], strides = [1, 1]} : vector<2x64xf32> to vector<2x16xf32>
    %240 = vector.extract_strided_slice %238 {offsets = [0, 16], sizes = [2, 16], strides = [1, 1]} : vector<2x64xf32> to vector<2x16xf32>
    %241 = vector.extract_strided_slice %238 {offsets = [0, 32], sizes = [2, 16], strides = [1, 1]} : vector<2x64xf32> to vector<2x16xf32>
    %242 = vector.extract_strided_slice %238 {offsets = [0, 48], sizes = [2, 16], strides = [1, 1]} : vector<2x64xf32> to vector<2x16xf32>
    %243 = arith.mulf %240, %223 : vector<2x16xf32>
    %244 = arith.mulf %239, %241 : vector<2x16xf32>
    %245 = arith.addf %243, %244 : vector<2x16xf32>
    %246 = math.tanh %245 : vector<2x16xf32>
    %247 = arith.mulf %242, %246 : vector<2x16xf32>
    %248 = tpu.concatenate %93, %115, %137, %159, %181, %203, %225, %247 in 0 : vector<2x16xf32>, vector<2x16xf32>, vector<2x16xf32>, vector<2x16xf32>, vector<2x16xf32>, vector<2x16xf32>, vector<2x16xf32>, vector<2x16xf32> -> vector<16x16xf32>
    %249 = tpu.concatenate %247, %225, %203, %181, %159, %137, %115, %93 in 0 : vector<2x16xf32>, vector<2x16xf32>, vector<2x16xf32>, vector<2x16xf32>, vector<2x16xf32>, vector<2x16xf32>, vector<2x16xf32>, vector<2x16xf32> -> vector<16x16xf32>
    %250 = arith.select %29, %248, %249 : vector<16x16xi1>, vector<16x16xf32>
    %cst_49 = arith.constant dense<0.000000e+00> : vector<16x64xf32>
    %251 = tpu.matmul %250, %35, %cst_49 {dimension_numbers = #tpu.dot_dimension_numbers<[1], [0], [0], [1], [0, 0, 1, 1], [], []>} : vector<16x16xf32>, vector<16x64xf32>, vector<16x64xf32> -> vector<16x64xf32>
    %252 = vector.broadcast %40 : vector<1x64xf32> to vector<16x64xf32>
    %253 = arith.addf %251, %252 : vector<16x64xf32>
    %254 = vector.extract_strided_slice %253 {offsets = [0, 0], sizes = [2, 64], strides = [1, 1]} : vector<16x64xf32> to vector<2x64xf32>
    %255 = vector.extract_strided_slice %253 {offsets = [14, 0], sizes = [2, 64], strides = [1, 1]} : vector<16x64xf32> to vector<2x64xf32>
    %256 = arith.select %18, %254, %255 : vector<2x64xi1>, vector<2x64xf32>
    %257 = vector.extract_strided_slice %253 {offsets = [2, 0], sizes = [2, 64], strides = [1, 1]} : vector<16x64xf32> to vector<2x64xf32>
    %258 = vector.extract_strided_slice %253 {offsets = [12, 0], sizes = [2, 64], strides = [1, 1]} : vector<16x64xf32> to vector<2x64xf32>
    %259 = arith.select %18, %257, %258 : vector<2x64xi1>, vector<2x64xf32>
    %260 = vector.extract_strided_slice %253 {offsets = [4, 0], sizes = [2, 64], strides = [1, 1]} : vector<16x64xf32> to vector<2x64xf32>
    %261 = vector.extract_strided_slice %253 {offsets = [10, 0], sizes = [2, 64], strides = [1, 1]} : vector<16x64xf32> to vector<2x64xf32>
    %262 = arith.select %18, %260, %261 : vector<2x64xi1>, vector<2x64xf32>
    %263 = vector.extract_strided_slice %253 {offsets = [6, 0], sizes = [2, 64], strides = [1, 1]} : vector<16x64xf32> to vector<2x64xf32>
    %264 = vector.extract_strided_slice %253 {offsets = [8, 0], sizes = [2, 64], strides = [1, 1]} : vector<16x64xf32> to vector<2x64xf32>
    %265 = arith.select %18, %263, %264 : vector<2x64xi1>, vector<2x64xf32>
    %266 = vector.extract_strided_slice %253 {offsets = [8, 0], sizes = [2, 64], strides = [1, 1]} : vector<16x64xf32> to vector<2x64xf32>
    %267 = vector.extract_strided_slice %253 {offsets = [6, 0], sizes = [2, 64], strides = [1, 1]} : vector<16x64xf32> to vector<2x64xf32>
    %268 = arith.select %18, %266, %267 : vector<2x64xi1>, vector<2x64xf32>
    %269 = vector.extract_strided_slice %253 {offsets = [10, 0], sizes = [2, 64], strides = [1, 1]} : vector<16x64xf32> to vector<2x64xf32>
    %270 = vector.extract_strided_slice %253 {offsets = [4, 0], sizes = [2, 64], strides = [1, 1]} : vector<16x64xf32> to vector<2x64xf32>
    %271 = arith.select %18, %269, %270 : vector<2x64xi1>, vector<2x64xf32>
    %272 = vector.extract_strided_slice %253 {offsets = [12, 0], sizes = [2, 64], strides = [1, 1]} : vector<16x64xf32> to vector<2x64xf32>
    %273 = vector.extract_strided_slice %253 {offsets = [2, 0], sizes = [2, 64], strides = [1, 1]} : vector<16x64xf32> to vector<2x64xf32>
    %274 = arith.select %18, %272, %273 : vector<2x64xi1>, vector<2x64xf32>
    %275 = vector.extract_strided_slice %253 {offsets = [14, 0], sizes = [2, 64], strides = [1, 1]} : vector<16x64xf32> to vector<2x64xf32>
    %276 = vector.extract_strided_slice %253 {offsets = [0, 0], sizes = [2, 64], strides = [1, 1]} : vector<16x64xf32> to vector<2x64xf32>
    %277 = arith.select %18, %275, %276 : vector<2x64xi1>, vector<2x64xf32>
    %cst_50 = arith.constant 0.000000e+00 : f32
    %278 = vector.broadcast %cst_50 : f32 to vector<2x16xf32>
    %cst_51 = arith.constant 0.000000e+00 : f32
    %279 = vector.broadcast %cst_51 : f32 to vector<2x16xf32>
    %cst_52 = arith.constant dense<0.000000e+00> : vector<2x64xf32>
    %280 = tpu.matmul %278, %36, %cst_52 {dimension_numbers = #tpu.dot_dimension_numbers<[1], [0], [0], [1], [0, 0, 1, 1], [], []>} : vector<2x16xf32>, vector<16x64xf32>, vector<2x64xf32> -> vector<2x64xf32>
    %281 = arith.addf %256, %280 : vector<2x64xf32>
    %282 = arith.mulf %281, %26 : vector<2x64xf32>
    %283 = arith.negf %282 : vector<2x64xf32>
    %284 = math.exp %283 : vector<2x64xf32>
    %cst_53 = arith.constant 1.000000e+00 : f32
    %285 = vector.broadcast %cst_53 : f32 to vector<2x64xf32>
    %286 = arith.addf %285, %284 : vector<2x64xf32>
    %287 = arith.divf %285, %286 : vector<2x64xf32>
    %cst_54 = arith.constant 2.000000e+00 : f32
    %288 = vector.broadcast %cst_54 : f32 to vector<2x64xf32>
    %289 = arith.mulf %288, %287 : vector<2x64xf32>
    %cst_55 = arith.constant 1.000000e+00 : f32
    %290 = vector.broadcast %cst_55 : f32 to vector<2x64xf32>
    %291 = arith.subf %289, %290 : vector<2x64xf32>
    %292 = arith.select %23, %291, %287 : vector<2x64xi1>, vector<2x64xf32>
    %293 = vector.extract_strided_slice %292 {offsets = [0, 0], sizes = [2, 16], strides = [1, 1]} : vector<2x64xf32> to vector<2x16xf32>
    %294 = vector.extract_strided_slice %292 {offsets = [0, 16], sizes = [2, 16], strides = [1, 1]} : vector<2x64xf32> to vector<2x16xf32>
    %295 = vector.extract_strided_slice %292 {offsets = [0, 32], sizes = [2, 16], strides = [1, 1]} : vector<2x64xf32> to vector<2x16xf32>
    %296 = vector.extract_strided_slice %292 {offsets = [0, 48], sizes = [2, 16], strides = [1, 1]} : vector<2x64xf32> to vector<2x16xf32>
    %297 = arith.mulf %294, %279 : vector<2x16xf32>
    %298 = arith.mulf %293, %295 : vector<2x16xf32>
    %299 = arith.addf %297, %298 : vector<2x16xf32>
    %300 = math.tanh %299 : vector<2x16xf32>
    %301 = arith.mulf %296, %300 : vector<2x16xf32>
    %cst_56 = arith.constant dense<0.000000e+00> : vector<2x64xf32>
    %302 = tpu.matmul %301, %36, %cst_56 {dimension_numbers = #tpu.dot_dimension_numbers<[1], [0], [0], [1], [0, 0, 1, 1], [], []>} : vector<2x16xf32>, vector<16x64xf32>, vector<2x64xf32> -> vector<2x64xf32>
    %303 = arith.addf %259, %302 : vector<2x64xf32>
    %304 = arith.mulf %303, %26 : vector<2x64xf32>
    %305 = arith.negf %304 : vector<2x64xf32>
    %306 = math.exp %305 : vector<2x64xf32>
    %cst_57 = arith.constant 1.000000e+00 : f32
    %307 = vector.broadcast %cst_57 : f32 to vector<2x64xf32>
    %308 = arith.addf %307, %306 : vector<2x64xf32>
    %309 = arith.divf %307, %308 : vector<2x64xf32>
    %cst_58 = arith.constant 2.000000e+00 : f32
    %310 = vector.broadcast %cst_58 : f32 to vector<2x64xf32>
    %311 = arith.mulf %310, %309 : vector<2x64xf32>
    %cst_59 = arith.constant 1.000000e+00 : f32
    %312 = vector.broadcast %cst_59 : f32 to vector<2x64xf32>
    %313 = arith.subf %311, %312 : vector<2x64xf32>
    %314 = arith.select %23, %313, %309 : vector<2x64xi1>, vector<2x64xf32>
    %315 = vector.extract_strided_slice %314 {offsets = [0, 0], sizes = [2, 16], strides = [1, 1]} : vector<2x64xf32> to vector<2x16xf32>
    %316 = vector.extract_strided_slice %314 {offsets = [0, 16], sizes = [2, 16], strides = [1, 1]} : vector<2x64xf32> to vector<2x16xf32>
    %317 = vector.extract_strided_slice %314 {offsets = [0, 32], sizes = [2, 16], strides = [1, 1]} : vector<2x64xf32> to vector<2x16xf32>
    %318 = vector.extract_strided_slice %314 {offsets = [0, 48], sizes = [2, 16], strides = [1, 1]} : vector<2x64xf32> to vector<2x16xf32>
    %319 = arith.mulf %316, %299 : vector<2x16xf32>
    %320 = arith.mulf %315, %317 : vector<2x16xf32>
    %321 = arith.addf %319, %320 : vector<2x16xf32>
    %322 = math.tanh %321 : vector<2x16xf32>
    %323 = arith.mulf %318, %322 : vector<2x16xf32>
    %cst_60 = arith.constant dense<0.000000e+00> : vector<2x64xf32>
    %324 = tpu.matmul %323, %36, %cst_60 {dimension_numbers = #tpu.dot_dimension_numbers<[1], [0], [0], [1], [0, 0, 1, 1], [], []>} : vector<2x16xf32>, vector<16x64xf32>, vector<2x64xf32> -> vector<2x64xf32>
    %325 = arith.addf %262, %324 : vector<2x64xf32>
    %326 = arith.mulf %325, %26 : vector<2x64xf32>
    %327 = arith.negf %326 : vector<2x64xf32>
    %328 = math.exp %327 : vector<2x64xf32>
    %cst_61 = arith.constant 1.000000e+00 : f32
    %329 = vector.broadcast %cst_61 : f32 to vector<2x64xf32>
    %330 = arith.addf %329, %328 : vector<2x64xf32>
    %331 = arith.divf %329, %330 : vector<2x64xf32>
    %cst_62 = arith.constant 2.000000e+00 : f32
    %332 = vector.broadcast %cst_62 : f32 to vector<2x64xf32>
    %333 = arith.mulf %332, %331 : vector<2x64xf32>
    %cst_63 = arith.constant 1.000000e+00 : f32
    %334 = vector.broadcast %cst_63 : f32 to vector<2x64xf32>
    %335 = arith.subf %333, %334 : vector<2x64xf32>
    %336 = arith.select %23, %335, %331 : vector<2x64xi1>, vector<2x64xf32>
    %337 = vector.extract_strided_slice %336 {offsets = [0, 0], sizes = [2, 16], strides = [1, 1]} : vector<2x64xf32> to vector<2x16xf32>
    %338 = vector.extract_strided_slice %336 {offsets = [0, 16], sizes = [2, 16], strides = [1, 1]} : vector<2x64xf32> to vector<2x16xf32>
    %339 = vector.extract_strided_slice %336 {offsets = [0, 32], sizes = [2, 16], strides = [1, 1]} : vector<2x64xf32> to vector<2x16xf32>
    %340 = vector.extract_strided_slice %336 {offsets = [0, 48], sizes = [2, 16], strides = [1, 1]} : vector<2x64xf32> to vector<2x16xf32>
    %341 = arith.mulf %338, %321 : vector<2x16xf32>
    %342 = arith.mulf %337, %339 : vector<2x16xf32>
    %343 = arith.addf %341, %342 : vector<2x16xf32>
    %344 = math.tanh %343 : vector<2x16xf32>
    %345 = arith.mulf %340, %344 : vector<2x16xf32>
    %cst_64 = arith.constant dense<0.000000e+00> : vector<2x64xf32>
    %346 = tpu.matmul %345, %36, %cst_64 {dimension_numbers = #tpu.dot_dimension_numbers<[1], [0], [0], [1], [0, 0, 1, 1], [], []>} : vector<2x16xf32>, vector<16x64xf32>, vector<2x64xf32> -> vector<2x64xf32>
    %347 = arith.addf %265, %346 : vector<2x64xf32>
    %348 = arith.mulf %347, %26 : vector<2x64xf32>
    %349 = arith.negf %348 : vector<2x64xf32>
    %350 = math.exp %349 : vector<2x64xf32>
    %cst_65 = arith.constant 1.000000e+00 : f32
    %351 = vector.broadcast %cst_65 : f32 to vector<2x64xf32>
    %352 = arith.addf %351, %350 : vector<2x64xf32>
    %353 = arith.divf %351, %352 : vector<2x64xf32>
    %cst_66 = arith.constant 2.000000e+00 : f32
    %354 = vector.broadcast %cst_66 : f32 to vector<2x64xf32>
    %355 = arith.mulf %354, %353 : vector<2x64xf32>
    %cst_67 = arith.constant 1.000000e+00 : f32
    %356 = vector.broadcast %cst_67 : f32 to vector<2x64xf32>
    %357 = arith.subf %355, %356 : vector<2x64xf32>
    %358 = arith.select %23, %357, %353 : vector<2x64xi1>, vector<2x64xf32>
    %359 = vector.extract_strided_slice %358 {offsets = [0, 0], sizes = [2, 16], strides = [1, 1]} : vector<2x64xf32> to vector<2x16xf32>
    %360 = vector.extract_strided_slice %358 {offsets = [0, 16], sizes = [2, 16], strides = [1, 1]} : vector<2x64xf32> to vector<2x16xf32>
    %361 = vector.extract_strided_slice %358 {offsets = [0, 32], sizes = [2, 16], strides = [1, 1]} : vector<2x64xf32> to vector<2x16xf32>
    %362 = vector.extract_strided_slice %358 {offsets = [0, 48], sizes = [2, 16], strides = [1, 1]} : vector<2x64xf32> to vector<2x16xf32>
    %363 = arith.mulf %360, %343 : vector<2x16xf32>
    %364 = arith.mulf %359, %361 : vector<2x16xf32>
    %365 = arith.addf %363, %364 : vector<2x16xf32>
    %366 = math.tanh %365 : vector<2x16xf32>
    %367 = arith.mulf %362, %366 : vector<2x16xf32>
    %cst_68 = arith.constant dense<0.000000e+00> : vector<2x64xf32>
    %368 = tpu.matmul %367, %36, %cst_68 {dimension_numbers = #tpu.dot_dimension_numbers<[1], [0], [0], [1], [0, 0, 1, 1], [], []>} : vector<2x16xf32>, vector<16x64xf32>, vector<2x64xf32> -> vector<2x64xf32>
    %369 = arith.addf %268, %368 : vector<2x64xf32>
    %370 = arith.mulf %369, %26 : vector<2x64xf32>
    %371 = arith.negf %370 : vector<2x64xf32>
    %372 = math.exp %371 : vector<2x64xf32>
    %cst_69 = arith.constant 1.000000e+00 : f32
    %373 = vector.broadcast %cst_69 : f32 to vector<2x64xf32>
    %374 = arith.addf %373, %372 : vector<2x64xf32>
    %375 = arith.divf %373, %374 : vector<2x64xf32>
    %cst_70 = arith.constant 2.000000e+00 : f32
    %376 = vector.broadcast %cst_70 : f32 to vector<2x64xf32>
    %377 = arith.mulf %376, %375 : vector<2x64xf32>
    %cst_71 = arith.constant 1.000000e+00 : f32
    %378 = vector.broadcast %cst_71 : f32 to vector<2x64xf32>
    %379 = arith.subf %377, %378 : vector<2x64xf32>
    %380 = arith.select %23, %379, %375 : vector<2x64xi1>, vector<2x64xf32>
    %381 = vector.extract_strided_slice %380 {offsets = [0, 0], sizes = [2, 16], strides = [1, 1]} : vector<2x64xf32> to vector<2x16xf32>
    %382 = vector.extract_strided_slice %380 {offsets = [0, 16], sizes = [2, 16], strides = [1, 1]} : vector<2x64xf32> to vector<2x16xf32>
    %383 = vector.extract_strided_slice %380 {offsets = [0, 32], sizes = [2, 16], strides = [1, 1]} : vector<2x64xf32> to vector<2x16xf32>
    %384 = vector.extract_strided_slice %380 {offsets = [0, 48], sizes = [2, 16], strides = [1, 1]} : vector<2x64xf32> to vector<2x16xf32>
    %385 = arith.mulf %382, %365 : vector<2x16xf32>
    %386 = arith.mulf %381, %383 : vector<2x16xf32>
    %387 = arith.addf %385, %386 : vector<2x16xf32>
    %388 = math.tanh %387 : vector<2x16xf32>
    %389 = arith.mulf %384, %388 : vector<2x16xf32>
    %cst_72 = arith.constant dense<0.000000e+00> : vector<2x64xf32>
    %390 = tpu.matmul %389, %36, %cst_72 {dimension_numbers = #tpu.dot_dimension_numbers<[1], [0], [0], [1], [0, 0, 1, 1], [], []>} : vector<2x16xf32>, vector<16x64xf32>, vector<2x64xf32> -> vector<2x64xf32>
    %391 = arith.addf %271, %390 : vector<2x64xf32>
    %392 = arith.mulf %391, %26 : vector<2x64xf32>
    %393 = arith.negf %392 : vector<2x64xf32>
    %394 = math.exp %393 : vector<2x64xf32>
    %cst_73 = arith.constant 1.000000e+00 : f32
    %395 = vector.broadcast %cst_73 : f32 to vector<2x64xf32>
    %396 = arith.addf %395, %394 : vector<2x64xf32>
    %397 = arith.divf %395, %396 : vector<2x64xf32>
    %cst_74 = arith.constant 2.000000e+00 : f32
    %398 = vector.broadcast %cst_74 : f32 to vector<2x64xf32>
    %399 = arith.mulf %398, %397 : vector<2x64xf32>
    %cst_75 = arith.constant 1.000000e+00 : f32
    %400 = vector.broadcast %cst_75 : f32 to vector<2x64xf32>
    %401 = arith.subf %399, %400 : vector<2x64xf32>
    %402 = arith.select %23, %401, %397 : vector<2x64xi1>, vector<2x64xf32>
    %403 = vector.extract_strided_slice %402 {offsets = [0, 0], sizes = [2, 16], strides = [1, 1]} : vector<2x64xf32> to vector<2x16xf32>
    %404 = vector.extract_strided_slice %402 {offsets = [0, 16], sizes = [2, 16], strides = [1, 1]} : vector<2x64xf32> to vector<2x16xf32>
    %405 = vector.extract_strided_slice %402 {offsets = [0, 32], sizes = [2, 16], strides = [1, 1]} : vector<2x64xf32> to vector<2x16xf32>
    %406 = vector.extract_strided_slice %402 {offsets = [0, 48], sizes = [2, 16], strides = [1, 1]} : vector<2x64xf32> to vector<2x16xf32>
    %407 = arith.mulf %404, %387 : vector<2x16xf32>
    %408 = arith.mulf %403, %405 : vector<2x16xf32>
    %409 = arith.addf %407, %408 : vector<2x16xf32>
    %410 = math.tanh %409 : vector<2x16xf32>
    %411 = arith.mulf %406, %410 : vector<2x16xf32>
    %cst_76 = arith.constant dense<0.000000e+00> : vector<2x64xf32>
    %412 = tpu.matmul %411, %36, %cst_76 {dimension_numbers = #tpu.dot_dimension_numbers<[1], [0], [0], [1], [0, 0, 1, 1], [], []>} : vector<2x16xf32>, vector<16x64xf32>, vector<2x64xf32> -> vector<2x64xf32>
    %413 = arith.addf %274, %412 : vector<2x64xf32>
    %414 = arith.mulf %413, %26 : vector<2x64xf32>
    %415 = arith.negf %414 : vector<2x64xf32>
    %416 = math.exp %415 : vector<2x64xf32>
    %cst_77 = arith.constant 1.000000e+00 : f32
    %417 = vector.broadcast %cst_77 : f32 to vector<2x64xf32>
    %418 = arith.addf %417, %416 : vector<2x64xf32>
    %419 = arith.divf %417, %418 : vector<2x64xf32>
    %cst_78 = arith.constant 2.000000e+00 : f32
    %420 = vector.broadcast %cst_78 : f32 to vector<2x64xf32>
    %421 = arith.mulf %420, %419 : vector<2x64xf32>
    %cst_79 = arith.constant 1.000000e+00 : f32
    %422 = vector.broadcast %cst_79 : f32 to vector<2x64xf32>
    %423 = arith.subf %421, %422 : vector<2x64xf32>
    %424 = arith.select %23, %423, %419 : vector<2x64xi1>, vector<2x64xf32>
    %425 = vector.extract_strided_slice %424 {offsets = [0, 0], sizes = [2, 16], strides = [1, 1]} : vector<2x64xf32> to vector<2x16xf32>
    %426 = vector.extract_strided_slice %424 {offsets = [0, 16], sizes = [2, 16], strides = [1, 1]} : vector<2x64xf32> to vector<2x16xf32>
    %427 = vector.extract_strided_slice %424 {offsets = [0, 32], sizes = [2, 16], strides = [1, 1]} : vector<2x64xf32> to vector<2x16xf32>
    %428 = vector.extract_strided_slice %424 {offsets = [0, 48], sizes = [2, 16], strides = [1, 1]} : vector<2x64xf32> to vector<2x16xf32>
    %429 = arith.mulf %426, %409 : vector<2x16xf32>
    %430 = arith.mulf %425, %427 : vector<2x16xf32>
    %431 = arith.addf %429, %430 : vector<2x16xf32>
    %432 = math.tanh %431 : vector<2x16xf32>
    %433 = arith.mulf %428, %432 : vector<2x16xf32>
    %cst_80 = arith.constant dense<0.000000e+00> : vector<2x64xf32>
    %434 = tpu.matmul %433, %36, %cst_80 {dimension_numbers = #tpu.dot_dimension_numbers<[1], [0], [0], [1], [0, 0, 1, 1], [], []>} : vector<2x16xf32>, vector<16x64xf32>, vector<2x64xf32> -> vector<2x64xf32>
    %435 = arith.addf %277, %434 : vector<2x64xf32>
    %436 = arith.mulf %435, %26 : vector<2x64xf32>
    %437 = arith.negf %436 : vector<2x64xf32>
    %438 = math.exp %437 : vector<2x64xf32>
    %cst_81 = arith.constant 1.000000e+00 : f32
    %439 = vector.broadcast %cst_81 : f32 to vector<2x64xf32>
    %440 = arith.addf %439, %438 : vector<2x64xf32>
    %441 = arith.divf %439, %440 : vector<2x64xf32>
    %cst_82 = arith.constant 2.000000e+00 : f32
    %442 = vector.broadcast %cst_82 : f32 to vector<2x64xf32>
    %443 = arith.mulf %442, %441 : vector<2x64xf32>
    %cst_83 = arith.constant 1.000000e+00 : f32
    %444 = vector.broadcast %cst_83 : f32 to vector<2x64xf32>
    %445 = arith.subf %443, %444 : vector<2x64xf32>
    %446 = arith.select %23, %445, %441 : vector<2x64xi1>, vector<2x64xf32>
    %447 = vector.extract_strided_slice %446 {offsets = [0, 0], sizes = [2, 16], strides = [1, 1]} : vector<2x64xf32> to vector<2x16xf32>
    %448 = vector.extract_strided_slice %446 {offsets = [0, 16], sizes = [2, 16], strides = [1, 1]} : vector<2x64xf32> to vector<2x16xf32>
    %449 = vector.extract_strided_slice %446 {offsets = [0, 32], sizes = [2, 16], strides = [1, 1]} : vector<2x64xf32> to vector<2x16xf32>
    %450 = vector.extract_strided_slice %446 {offsets = [0, 48], sizes = [2, 16], strides = [1, 1]} : vector<2x64xf32> to vector<2x16xf32>
    %451 = arith.mulf %448, %431 : vector<2x16xf32>
    %452 = arith.mulf %447, %449 : vector<2x16xf32>
    %453 = arith.addf %451, %452 : vector<2x16xf32>
    %454 = math.tanh %453 : vector<2x16xf32>
    %455 = arith.mulf %450, %454 : vector<2x16xf32>
    %456 = arith.select %32, %455, %301 : vector<2x16xi1>, vector<2x16xf32>
    %cst_84 = arith.constant dense<0.000000e+00> : vector<2x64xf32>
    %457 = tpu.matmul %456, %37, %cst_84 {dimension_numbers = #tpu.dot_dimension_numbers<[1], [0], [0], [1], [0, 0, 1, 1], [], []>} : vector<2x16xf32>, vector<16x64xf32>, vector<2x64xf32> -> vector<2x64xf32>
    %458 = vector.broadcast %41 : vector<1x64xf32> to vector<2x64xf32>
    %459 = arith.addf %457, %458 : vector<2x64xf32>
    %460 = vector.extract_strided_slice %459 {offsets = [0, 0], sizes = [2, 5], strides = [1, 1]} : vector<2x64xf32> to vector<2x5xf32>
    %c0_85 = arith.constant 0 : index
    %c0_86 = arith.constant 0 : index
    %461 = vector.load %arg2[%c0_85, %c0_86] : memref<2x5xf32, #tpu.memory_space<vmem>>, vector<2x5xf32>
    tpu.vector_store %arg2[%c0_85, %c0_86], %460 {strides = array<i32>} : memref<2x5xf32, #tpu.memory_space<vmem>>, vector<2x5xf32>,
    return
  }
}

</mosaic_0001>

<llo_original>
// kernel: bilstm_forward.1
$region0: #{bilstm_forward.1}
  #allocation0 [shape = 'u32[]', space=smem, size = 0x4, offset = 0x4, fixed_abs, tag = 'smem constant byte address 0x4 - core index']
  #allocation1 [shape = 'u32[144,128]{1,0:T(1,128)}', space=vmem, size = 0x12000, scoped, tag = 'internal scratch']
  %s0 = inlined_call_operand.vmem [shape: f32[16,16], index: 0, kind: input, shape index: {}]
  %s1 = inlined_call_operand.vmem [shape: f32[88,64], index: 1, kind: input, shape index: {}]
  %s2 = inlined_call_operand.hbm [shape: f32[2,5], index: 2, kind: output, shape index: {}]
  %s3 = sld [smem:[#allocation0]]
  $region18: #{bilstm_forward.1} parent=0
    _
  %s5 = ssub.s32 1, %s3
  %s6 = scalar_select 0, %s5, %s3
  $region1: #{bilstm_forward.1} parent=0
    #allocation2 [shape = 'u8[1024]{0}', space=vmem, size = 0x400, scoped, tag = 'output window, operand 0, single buffered']
    #allocation3 [shape = 's32[1]{0}', space=sflag, size = 0x4, scoped, tag = 'scoped memory for bilstm_forward.1']
    %7 = vsyncpa [#allocation3], 0
    // Predicated region
    $region2: #{bilstm_forward.1} parent=1 // pred_check
      _
    $region3: #{bilstm_forward.1} parent=1 // pred_check_branch
      %9 = sbr.rel (0) target = $region5
    $region4: #{bilstm_forward.1} parent=1 // pred_region
      _
    $region5: #{bilstm_forward.1} parent=1 // pred_fallthru
      _
    // Predicated region
    $region6: #{bilstm_forward.1} parent=1 // pred_check
      _
    $region7: #{bilstm_forward.1} parent=1 // pred_check_branch
      %11 = sbr.rel (0) target = $region9
    $region8: #{bilstm_forward.1} parent=1 // pred_region
      _
    $region9: #{bilstm_forward.1} parent=1 // pred_fallthru
      _
    %v12 = vlaneseq
    %v13 = vand.u32 %v12, 127
    %vm14 = vcmp.lt.s32.totalorder %v13, 0
    %v15 = vsub.s32 0, %v13
    %v16 = vsel %vm14, %v15, %v13
    %v17 = vshrl.u32 %v16, 4
    %v18 = vand.u32 %v16, 15
    %v19 = vsub.s32 0, %v18
    %v20 = vsel %vm14, %v19, %v18
    %vm21 = vcmp.ne.s32.totalorder %v20, 0
    %vm22 = vcmp.lt.s32.totalorder %v20, 0
    %vm23 = vmand %vm22, %vm21
    %v24 = vadd.s32 %v20, 16
    %v25 = vsel %vm23, %v24, %v20
    %vm26 = vcmp.lt.s32.totalorder %v25, 8
    %vm27 = vcmp.ge.s32.totalorder %v13, 32
    %vm28 = vcmp.lt.s32.totalorder %v13, 48
    %vm29 = vmand %vm27, %vm28
    %v30 = vsel %vm29, 2.0, 1.0
    %vm31 = vcmp.lt.s32.totalorder %v13, 8
    %v32 = vld [vmem:[%s1] sm:$0xff]
    %v33 = vld [vmem:[%s1 + $0x8] sm:$0xff]
    %v34 = vld [vmem:[%s1 + $0x10] sm:$0xff]
    %v35 = vld [vmem:[%s1 + $0x18] sm:$0xff]
    %v36 = vld [vmem:[%s1 + $0x20] sm:$0xff]
    %v37 = vld [vmem:[%s1 + $0x28] sm:$0xff]
    %v38 = vld [vmem:[%s1 + $0x30] sm:$0xff]
    %v39 = vld [vmem:[%s1 + $0x38] sm:$0xff]
    %v40 = vld [vmem:[%s1 + $0x40] sm:$0xff]
    %v41 = vld [vmem:[%s1 + $0x48] sm:$0xff]
    %v42 = vld [vmem:[%s1 + $0x50] sm:$0xff]
    %v43 = vld [vmem:[%s0] sm:$0xff]
    %v44 = vld [vmem:[%s0 + $0x8] sm:$0xff]
    %v45 = vlaneseq
    %v46 = vshrl.u32 %v45, 7
    %v47 = vsub.s32 0, %v46
    %v48 = vrot.slane %v42, %v47
    %vm49 = vcmask 130048
    %v51 = vsel %vm49, %v43, 0
    %v54 = vsel %vm49, %v44, 0
    %56 = vmatprep.subr.mxu0 0.0
    %57 = vmatpush1.msra.mxu0 %v32
    %58 = vmatprep.subr.mxu0 0.0
    %59 = vmatpush1.msra.mxu0 %v33
    %60 = vmatprep.subr.mxu0 0.0
    %61 = vmatpush1.msra.mxu0 0.0
    %62 = vmatprep.subr.mxu0 0.0
    %63 = vmatpush1.msra.mxu0 0.0
    %64 = vmatprep.subr.mxu0 0.0
    %65 = vmatpush1.msra.mxu0 0.0
    %66 = vmatprep.subr.mxu0 0.0
    %67 = vmatpush1.msra.mxu0 0.0
    %68 = vmatprep.subr.mxu0 0.0
    %69 = vmatpush1.msra.mxu0 0.0
    %70 = vmatprep.subr.mxu0 0.0
    %71 = vmatpush1.msra.mxu0 0.0
    %72 = vmatprep.subr.mxu0 0.0
    %73 = vmatpush1.msra.mxu0 0.0
    %74 = vmatprep.subr.mxu0 0.0
    %75 = vmatpush1.msra.mxu0 0.0
    %76 = vmatprep.subr.mxu0 0.0
    %77 = vmatpush1.msra.mxu0 0.0
    %78 = vmatprep.subr.mxu0 0.0
    %79 = vmatpush1.msra.mxu0 0.0
    %80 = vmatprep.subr.mxu0 0.0
    %81 = vmatpush1.msra.mxu0 0.0
    %82 = vmatprep.subr.mxu0 0.0
    %83 = vmatpush1.msra.mxu0 0.0
    %84 = vmatprep.subr.mxu0 0.0
    %85 = vmatpush1.msra.mxu0 0.0
    %86 = vmatprep.subr.mxu0 0.0
    %87 = vmatpush1.msra.mxu0 0.0
    %88 = vmatprep.subr.mxu0 0.0
    %89 = vmatpush1.msra.mxu0 0.0
    %90 = vmatprep.subr.mxu0 0.0
    %91 = vmatpush1.msra.mxu0 0.0
    %92 = vmatprep.subr.mxu0 0.0
    %93 = vmatpush1.msra.mxu0 0.0
    %94 = vmatprep.subr.mxu0 0.0
    %95 = vmatpush1.msra.mxu0 0.0
    %96 = vmatprep.subr.mxu0 0.0
    %97 = vmatpush1.msra.mxu0 0.0
    %98 = vmatprep.subr.mxu0 0.0
    %99 = vmatpush1.msra.mxu0 0.0
    %100 = vmatprep.subr.mxu0 0.0
    %101 = vmatpush1.msra.mxu0 0.0
    %102 = vmatprep.subr.mxu0 0.0
    %103 = vmatpush1.msra.mxu0 0.0
    %104 = vmatprep.subr.mxu0 0.0
    %105 = vmatpush1.msra.mxu0 0.0
    %106 = vmatprep.subr.mxu0 0.0
    %107 = vmatpush1.msra.mxu0 0.0
    %108 = vmatprep.subr.mxu0 0.0
    %109 = vmatpush1.msra.mxu0 0.0
    %110 = vmatprep.subr.mxu0 0.0
    %111 = vmatpush1.msra.mxu0 0.0
    %112 = vmatprep.subr.mxu0 0.0
    %113 = vmatpush1.msra.mxu0 0.0
    %114 = vmatprep.subr.mxu0 0.0
    %115 = vmatpush1.msra.mxu0 0.0
    %116 = vmatprep.subr.mxu0 0.0
    %117 = vmatpush1.msra.mxu0 0.0
    %118 = vmatprep.subr.mxu0 0.0
    %119 = vmatpush1.msra.mxu0 0.0
    %120 = vmatprep.mubr.f32.mxu0 0.0
    %121 = vmatmul.mubr.f32.gmra.mrb[0].mxu0 %v51
    %v122 = vpop.f32.mrb[0].mxu0
    %v123 = vadd.f32 %v48, %v122
    %v124 = vpop.f32.mrb[0].mxu0
    %125 = vmatprep.mubr.f32.mxu0 0.0
    %126 = vmatmul.mubr.f32.gmra.mrb[0].mxu0 %v54
    %v127 = vpop.f32.mrb[0].mxu0
    %v128 = vadd.f32 %v48, %v127
    %v129 = vpop.f32.mrb[0].mxu0
    %130 = vdwg.mxu0
    %v132 = vrot.slane %v128, 6
    %v134 = vsel %vm26, %v123, %v132
    %v135 = vrot.slane %v128, 2
    %v137 = vsel %vm26, %v123, %v135
    %v139 = vrot.slane %v123, 6
    %v141 = vsel %vm26, %v128, %v139
    %v142 = vrot.slane %v123, 2
    %v144 = vsel %vm26, %v128, %v142
    %v146 = vsel %vm49, 0.0, 0
    %148 = vmatprep.subr.mxu0 0.0
    %149 = vmatpush1.msra.mxu0 %v34
    %150 = vmatprep.subr.mxu0 0.0
    %151 = vmatpush1.msra.mxu0 %v35
    %152 = vmatprep.subr.mxu0 0.0
    %153 = vmatpush1.msra.mxu0 0.0
    %154 = vmatprep.subr.mxu0 0.0
    %155 = vmatpush1.msra.mxu0 0.0
    %156 = vmatprep.subr.mxu0 0.0
    %157 = vmatpush1.msra.mxu0 0.0
    %158 = vmatprep.subr.mxu0 0.0
    %159 = vmatpush1.msra.mxu0 0.0
    %160 = vmatprep.subr.mxu0 0.0
    %161 = vmatpush1.msra.mxu0 0.0
    %162 = vmatprep.subr.mxu0 0.0
    %163 = vmatpush1.msra.mxu0 0.0
    %164 = vmatprep.subr.mxu0 0.0
    %165 = vmatpush1.msra.mxu0 0.0
    %166 = vmatprep.subr.mxu0 0.0
    %167 = vmatpush1.msra.mxu0 0.0
    %168 = vmatprep.subr.mxu0 0.0
    %169 = vmatpush1.msra.mxu0 0.0
    %170 = vmatprep.subr.mxu0 0.0
    %171 = vmatpush1.msra.mxu0 0.0
    %172 = vmatprep.subr.mxu0 0.0
    %173 = vmatpush1.msra.mxu0 0.0
    %174 = vmatprep.subr.mxu0 0.0
    %175 = vmatpush1.msra.mxu0 0.0
    %176 = vmatprep.subr.mxu0 0.0
    %177 = vmatpush1.msra.mxu0 0.0
    %178 = vmatprep.subr.mxu0 0.0
    %179 = vmatpush1.msra.mxu0 0.0
    %180 = vmatprep.subr.mxu0 0.0
    %181 = vmatpush1.msra.mxu0 0.0
    %182 = vmatprep.subr.mxu0 0.0
    %183 = vmatpush1.msra.mxu0 0.0
    %184 = vmatprep.subr.mxu0 0.0
    %185 = vmatpush1.msra.mxu0 0.0
    %186 = vmatprep.subr.mxu0 0.0
    %187 = vmatpush1.msra.mxu0 0.0
    %188 = vmatprep.subr.mxu0 0.0
    %189 = vmatpush1.msra.mxu0 0.0
    %190 = vmatprep.subr.mxu0 0.0
    %191 = vmatpush1.msra.mxu0 0.0
    %192 = vmatprep.subr.mxu0 0.0
    %193 = vmatpush1.msra.mxu0 0.0
    %194 = vmatprep.subr.mxu0 0.0
    %195 = vmatpush1.msra.mxu0 0.0
    %196 = vmatprep.subr.mxu0 0.0
    %197 = vmatpush1.msra.mxu0 0.0
    %198 = vmatprep.subr.mxu0 0.0
    %199 = vmatpush1.msra.mxu0 0.0
    %200 = vmatprep.subr.mxu0 0.0
    %201 = vmatpush1.msra.mxu0 0.0
    %202 = vmatprep.subr.mxu0 0.0
    %203 = vmatpush1.msra.mxu0 0.0
    %204 = vmatprep.subr.mxu0 0.0
    %205 = vmatpush1.msra.mxu0 0.0
    %206 = vmatprep.subr.mxu0 0.0
    %207 = vmatpush1.msra.mxu0 0.0
    %208 = vmatprep.subr.mxu0 0.0
    %209 = vmatpush1.msra.mxu0 0.0
    %210 = vmatprep.subr.mxu0 0.0
    %211 = vmatpush1.msra.mxu0 0.0
    %212 = vmatprep.mubr.f32.mxu0 0.0
    %213 = vmatmul.mubr.f32.gmra.mrb[0].mxu0 %v146
    %v214 = vpop.f32.mrb[0].mxu0
    %v215 = vadd.f32 0.0, %v214
    %v216 = vpop.f32.mrb[0].mxu0
    %217 = vdwg.mxu0
    %v218 = vadd.f32 %v134, %v215
    %v219 = vmul.f32 %v218, %v30
    %v220 = vxor.u32 %v219, 2147483648
    %v221 = vmul.f32 %v220, 1.442695
    %v222 = vpow.pop %v221
    %v223 = vadd.f32 %v222, 1.0
    %v224 = vrcp.pop %v223
    %v225 = vmul.f32 1.0, %v224
    %v226 = vmul.f32 %v225, 2.0
    %v227 = vsub.f32 %v226, 1.0
    %v228 = vsel %vm29, %v227, %v225
    %v229 = vmul.f32 %v228, 0.0
    %231 = vrot.lane.b32.xlu0 %v228, 96
    %v232 = vpop.permute.xlu0 %231
    %v234 = vmul.f32 %v228, %v232
    %236 = vrot.lane.b32.xlu0 %v234, 16
    %v237 = vpop.permute.xlu0 %236
    %v239 = vadd.f32 %v229, %v237
    %v240 = vtanh.pop %v239
    %242 = vrot.lane.b32.xlu0 %v240, 32
    %v243 = vpop.permute.xlu0 %242
    %v245 = vmul.f32 %v228, %v243
    %247 = vrot.lane.b32.xlu0 %v245, 80
    %v248 = vpop.permute.xlu0 %247
    %v249 = vsel %vm49, %v248, 0
    %251 = vmatprep.subr.mxu0 0.0
    %252 = vmatpush1.msra.mxu0 %v34
    %253 = vmatprep.subr.mxu0 0.0
    %254 = vmatpush1.msra.mxu0 %v35
    %255 = vmatprep.subr.mxu0 0.0
    %256 = vmatpush1.msra.mxu0 0.0
    %257 = vmatprep.subr.mxu0 0.0
    %258 = vmatpush1.msra.mxu0 0.0
    %259 = vmatprep.subr.mxu0 0.0
    %260 = vmatpush1.msra.mxu0 0.0
    %261 = vmatprep.subr.mxu0 0.0
    %262 = vmatpush1.msra.mxu0 0.0
    %263 = vmatprep.subr.mxu0 0.0
    %264 = vmatpush1.msra.mxu0 0.0
    %265 = vmatprep.subr.mxu0 0.0
    %266 = vmatpush1.msra.mxu0 0.0
    %267 = vmatprep.subr.mxu0 0.0
    %268 = vmatpush1.msra.mxu0 0.0
    %269 = vmatprep.subr.mxu0 0.0
    %270 = vmatpush1.msra.mxu0 0.0
    %271 = vmatprep.subr.mxu0 0.0
    %272 = vmatpush1.msra.mxu0 0.0
    %273 = vmatprep.subr.mxu0 0.0
    %274 = vmatpush1.msra.mxu0 0.0
    %275 = vmatprep.subr.mxu0 0.0
    %276 = vmatpush1.msra.mxu0 0.0
    %277 = vmatprep.subr.mxu0 0.0
    %278 = vmatpush1.msra.mxu0 0.0
    %279 = vmatprep.subr.mxu0 0.0
    %280 = vmatpush1.msra.mxu0 0.0
    %281 = vmatprep.subr.mxu0 0.0
    %282 = vmatpush1.msra.mxu0 0.0
    %283 = vmatprep.subr.mxu0 0.0
    %284 = vmatpush1.msra.mxu0 0.0
    %285 = vmatprep.subr.mxu0 0.0
    %286 = vmatpush1.msra.mxu0 0.0
    %287 = vmatprep.subr.mxu0 0.0
    %288 = vmatpush1.msra.mxu0 0.0
    %289 = vmatprep.subr.mxu0 0.0
    %290 = vmatpush1.msra.mxu0 0.0
    %291 = vmatprep.subr.mxu0 0.0
    %292 = vmatpush1.msra.mxu0 0.0
    %293 = vmatprep.subr.mxu0 0.0
    %294 = vmatpush1.msra.mxu0 0.0
    %295 = vmatprep.subr.mxu0 0.0
    %296 = vmatpush1.msra.mxu0 0.0
    %297 = vmatprep.subr.mxu0 0.0
    %298 = vmatpush1.msra.mxu0 0.0
    %299 = vmatprep.subr.mxu0 0.0
    %300 = vmatpush1.msra.mxu0 0.0
    %301 = vmatprep.subr.mxu0 0.0
    %302 = vmatpush1.msra.mxu0 0.0
    %303 = vmatprep.subr.mxu0 0.0
    %304 = vmatpush1.msra.mxu0 0.0
    %305 = vmatprep.subr.mxu0 0.0
    %306 = vmatpush1.msra.mxu0 0.0
    %307 = vmatprep.subr.mxu0 0.0
    %308 = vmatpush1.msra.mxu0 0.0
    %309 = vmatprep.subr.mxu0 0.0
    %310 = vmatpush1.msra.mxu0 0.0
    %311 = vmatprep.subr.mxu0 0.0
    %312 = vmatpush1.msra.mxu0 0.0
    %313 = vmatprep.subr.mxu0 0.0
    %314 = vmatpush1.msra.mxu0 0.0
    %315 = vmatprep.mubr.f32.mxu0 0.0
    %316 = vmatmul.mubr.f32.gmra.mrb[0].mxu0 %v249
    %v317 = vpop.f32.mrb[0].mxu0
    %v318 = vadd.f32 0.0, %v317
    %v319 = vpop.f32.mrb[0].mxu0
    %320 = vdwg.mxu0
    %v322 = vrot.slane %v318, 6
    %v324 = vadd.f32 %v137, %v322
    %v325 = vmul.f32 %v324, %v30
    %v326 = vxor.u32 %v325, 2147483648
    %v327 = vmul.f32 %v326, 1.442695
    %v328 = vpow.pop %v327
    %v329 = vadd.f32 %v328, 1.0
    %v330 = vrcp.pop %v329
    %v331 = vmul.f32 1.0, %v330
    %v332 = vmul.f32 %v331, 2.0
    %v333 = vsub.f32 %v332, 1.0
    %v334 = vsel %vm29, %v333, %v331
    %v336 = vrot.slane %v239, 6
    %v338 = vmul.f32 %v334, %v336
    %340 = vrot.lane.b32.xlu0 %v334, 96
    %v341 = vpop.permute.xlu0 %340
    %v343 = vmul.f32 %v334, %v341
    %345 = vrot.lane.b32.xlu0 %v343, 16
    %v346 = vpop.permute.xlu0 %345
    %v348 = vadd.f32 %v338, %v346
    %v349 = vtanh.pop %v348
    %351 = vrot.lane.b32.xlu0 %v349, 32
    %v352 = vpop.permute.xlu0 %351
    %v354 = vmul.f32 %v334, %v352
    %v356 = vrot.slane %v354, 2
    %357 = vrot.lane.b32.xlu0 %v356, 80
    %v358 = vpop.permute.xlu0 %357
    %v359 = vsel %vm49, %v358, 0
    %361 = vmatprep.subr.mxu0 0.0
    %362 = vmatpush1.msra.mxu0 %v34
    %363 = vmatprep.subr.mxu0 0.0
    %364 = vmatpush1.msra.mxu0 %v35
    %365 = vmatprep.subr.mxu0 0.0
    %366 = vmatpush1.msra.mxu0 0.0
    %367 = vmatprep.subr.mxu0 0.0
    %368 = vmatpush1.msra.mxu0 0.0
    %369 = vmatprep.subr.mxu0 0.0
    %370 = vmatpush1.msra.mxu0 0.0
    %371 = vmatprep.subr.mxu0 0.0
    %372 = vmatpush1.msra.mxu0 0.0
    %373 = vmatprep.subr.mxu0 0.0
    %374 = vmatpush1.msra.mxu0 0.0
    %375 = vmatprep.subr.mxu0 0.0
    %376 = vmatpush1.msra.mxu0 0.0
    %377 = vmatprep.subr.mxu0 0.0
    %378 = vmatpush1.msra.mxu0 0.0
    %379 = vmatprep.subr.mxu0 0.0
    %380 = vmatpush1.msra.mxu0 0.0
    %381 = vmatprep.subr.mxu0 0.0
    %382 = vmatpush1.msra.mxu0 0.0
    %383 = vmatprep.subr.mxu0 0.0
    %384 = vmatpush1.msra.mxu0 0.0
    %385 = vmatprep.subr.mxu0 0.0
    %386 = vmatpush1.msra.mxu0 0.0
    %387 = vmatprep.subr.mxu0 0.0
    %388 = vmatpush1.msra.mxu0 0.0
    %389 = vmatprep.subr.mxu0 0.0
    %390 = vmatpush1.msra.mxu0 0.0
    %391 = vmatprep.subr.mxu0 0.0
    %392 = vmatpush1.msra.mxu0 0.0
    %393 = vmatprep.subr.mxu0 0.0
    %394 = vmatpush1.msra.mxu0 0.0
    %395 = vmatprep.subr.mxu0 0.0
    %396 = vmatpush1.msra.mxu0 0.0
    %397 = vmatprep.subr.mxu0 0.0
    %398 = vmatpush1.msra.mxu0 0.0
    %399 = vmatprep.subr.mxu0 0.0
    %400 = vmatpush1.msra.mxu0 0.0
    %401 = vmatprep.subr.mxu0 0.0
    %402 = vmatpush1.msra.mxu0 0.0
    %403 = vmatprep.subr.mxu0 0.0
    %404 = vmatpush1.msra.mxu0 0.0
    %405 = vmatprep.subr.mxu0 0.0
    %406 = vmatpush1.msra.mxu0 0.0
    %407 = vmatprep.subr.mxu0 0.0
    %408 = vmatpush1.msra.mxu0 0.0
    %409 = vmatprep.subr.mxu0 0.0
    %410 = vmatpush1.msra.mxu0 0.0
    %411 = vmatprep.subr.mxu0 0.0
    %412 = vmatpush1.msra.mxu0 0.0
    %413 = vmatprep.subr.mxu0 0.0
    %414 = vmatpush1.msra.mxu0 0.0
    %415 = vmatprep.subr.mxu0 0.0
    %416 = vmatpush1.msra.mxu0 0.0
    %417 = vmatprep.subr.mxu0 0.0
    %418 = vmatpush1.msra.mxu0 0.0
    %419 = vmatprep.subr.mxu0 0.0
    %420 = vmatpush1.msra.mxu0 0.0
    %421 = vmatprep.subr.mxu0 0.0
    %422 = vmatpush1.msra.mxu0 0.0
    %423 = vmatprep.subr.mxu0 0.0
    %424 = vmatpush1.msra.mxu0 0.0
    %425 = vmatprep.mubr.f32.mxu0 0.0
    %426 = vmatmul.mubr.f32.gmra.mrb[0].mxu0 %v359
    %v427 = vpop.f32.mrb[0].mxu0
    %v428 = vadd.f32 0.0, %v427
    %v429 = vpop.f32.mrb[0].mxu0
    %430 = vdwg.mxu0
    %v432 = vrot.slane %v428, 4
    %v434 = vadd.f32 %v134, %v432
    %v435 = vmul.f32 %v434, %v30
    %v436 = vxor.u32 %v435, 2147483648
    %v437 = vmul.f32 %v436, 1.442695
    %v438 = vpow.pop %v437
    %v439 = vadd.f32 %v438, 1.0
    %v440 = vrcp.pop %v439
    %v441 = vmul.f32 1.0, %v440
    %v442 = vmul.f32 %v441, 2.0
    %v443 = vsub.f32 %v442, 1.0
    %v444 = vsel %vm29, %v443, %v441
    %v446 = vrot.slane %v348, 6
    %v448 = vmul.f32 %v444, %v446
    %450 = vrot.lane.b32.xlu0 %v444, 96
    %v451 = vpop.permute.xlu0 %450
    %v453 = vmul.f32 %v444, %v451
    %455 = vrot.lane.b32.xlu0 %v453, 16
    %v456 = vpop.permute.xlu0 %455
    %v458 = vadd.f32 %v448, %v456
    %v459 = vtanh.pop %v458
    %461 = vrot.lane.b32.xlu0 %v459, 32
    %v462 = vpop.permute.xlu0 %461
    %v464 = vmul.f32 %v444, %v462
    %v466 = vrot.slane %v464, 4
    %467 = vrot.lane.b32.xlu0 %v466, 80
    %v468 = vpop.permute.xlu0 %467
    %v469 = vsel %vm49, %v468, 0
    %471 = vmatprep.subr.mxu0 0.0
    %472 = vmatpush1.msra.mxu0 %v34
    %473 = vmatprep.subr.mxu0 0.0
    %474 = vmatpush1.msra.mxu0 %v35
    %475 = vmatprep.subr.mxu0 0.0
    %476 = vmatpush1.msra.mxu0 0.0
    %477 = vmatprep.subr.mxu0 0.0
    %478 = vmatpush1.msra.mxu0 0.0
    %479 = vmatprep.subr.mxu0 0.0
    %480 = vmatpush1.msra.mxu0 0.0
    %481 = vmatprep.subr.mxu0 0.0
    %482 = vmatpush1.msra.mxu0 0.0
    %483 = vmatprep.subr.mxu0 0.0
    %484 = vmatpush1.msra.mxu0 0.0
    %485 = vmatprep.subr.mxu0 0.0
    %486 = vmatpush1.msra.mxu0 0.0
    %487 = vmatprep.subr.mxu0 0.0
    %488 = vmatpush1.msra.mxu0 0.0
    %489 = vmatprep.subr.mxu0 0.0
    %490 = vmatpush1.msra.mxu0 0.0
    %491 = vmatprep.subr.mxu0 0.0
    %492 = vmatpush1.msra.mxu0 0.0
    %493 = vmatprep.subr.mxu0 0.0
    %494 = vmatpush1.msra.mxu0 0.0
    %495 = vmatprep.subr.mxu0 0.0
    %496 = vmatpush1.msra.mxu0 0.0
    %497 = vmatprep.subr.mxu0 0.0
    %498 = vmatpush1.msra.mxu0 0.0
    %499 = vmatprep.subr.mxu0 0.0
    %500 = vmatpush1.msra.mxu0 0.0
    %501 = vmatprep.subr.mxu0 0.0
    %502 = vmatpush1.msra.mxu0 0.0
    %503 = vmatprep.subr.mxu0 0.0
    %504 = vmatpush1.msra.mxu0 0.0
    %505 = vmatprep.subr.mxu0 0.0
    %506 = vmatpush1.msra.mxu0 0.0
    %507 = vmatprep.subr.mxu0 0.0
    %508 = vmatpush1.msra.mxu0 0.0
    %509 = vmatprep.subr.mxu0 0.0
    %510 = vmatpush1.msra.mxu0 0.0
    %511 = vmatprep.subr.mxu0 0.0
    %512 = vmatpush1.msra.mxu0 0.0
    %513 = vmatprep.subr.mxu0 0.0
    %514 = vmatpush1.msra.mxu0 0.0
    %515 = vmatprep.subr.mxu0 0.0
    %516 = vmatpush1.msra.mxu0 0.0
    %517 = vmatprep.subr.mxu0 0.0
    %518 = vmatpush1.msra.mxu0 0.0
    %519 = vmatprep.subr.mxu0 0.0
    %520 = vmatpush1.msra.mxu0 0.0
    %521 = vmatprep.subr.mxu0 0.0
    %522 = vmatpush1.msra.mxu0 0.0
    %523 = vmatprep.subr.mxu0 0.0
    %524 = vmatpush1.msra.mxu0 0.0
    %525 = vmatprep.subr.mxu0 0.0
    %526 = vmatpush1.msra.mxu0 0.0
    %527 = vmatprep.subr.mxu0 0.0
    %528 = vmatpush1.msra.mxu0 0.0
    %529 = vmatprep.subr.mxu0 0.0
    %530 = vmatpush1.msra.mxu0 0.0
    %531 = vmatprep.subr.mxu0 0.0
    %532 = vmatpush1.msra.mxu0 0.0
    %533 = vmatprep.subr.mxu0 0.0
    %534 = vmatpush1.msra.mxu0 0.0
    %535 = vmatprep.mubr.f32.mxu0 0.0
    %536 = vmatmul.mubr.f32.gmra.mrb[0].mxu0 %v469
    %v537 = vpop.f32.mrb[0].mxu0
    %v538 = vadd.f32 0.0, %v537
    %v539 = vpop.f32.mrb[0].mxu0
    %540 = vdwg.mxu0
    %v542 = vrot.slane %v538, 2
    %v544 = vadd.f32 %v137, %v542
    %v545 = vmul.f32 %v544, %v30
    %v546 = vxor.u32 %v545, 2147483648
    %v547 = vmul.f32 %v546, 1.442695
    %v548 = vpow.pop %v547
    %v549 = vadd.f32 %v548, 1.0
    %v550 = vrcp.pop %v549
    %v551 = vmul.f32 1.0, %v550
    %v552 = vmul.f32 %v551, 2.0
    %v553 = vsub.f32 %v552, 1.0
    %v554 = vsel %vm29, %v553, %v551
    %v556 = vrot.slane %v458, 6
    %v558 = vmul.f32 %v554, %v556
    %560 = vrot.lane.b32.xlu0 %v554, 96
    %v561 = vpop.permute.xlu0 %560
    %v563 = vmul.f32 %v554, %v561
    %565 = vrot.lane.b32.xlu0 %v563, 16
    %v566 = vpop.permute.xlu0 %565
    %v568 = vadd.f32 %v558, %v566
    %v569 = vtanh.pop %v568
    %571 = vrot.lane.b32.xlu0 %v569, 32
    %v572 = vpop.permute.xlu0 %571
    %v574 = vmul.f32 %v554, %v572
    %v576 = vrot.slane %v574, 6
    %577 = vrot.lane.b32.xlu0 %v576, 80
    %v578 = vpop.permute.xlu0 %577
    %v579 = vsel %vm49, %v578, 0
    %581 = vmatprep.subr.mxu0 0.0
    %582 = vmatpush1.msra.mxu0 %v34
    %583 = vmatprep.subr.mxu0 0.0
    %584 = vmatpush1.msra.mxu0 %v35
    %585 = vmatprep.subr.mxu0 0.0
    %586 = vmatpush1.msra.mxu0 0.0
    %587 = vmatprep.subr.mxu0 0.0
    %588 = vmatpush1.msra.mxu0 0.0
    %589 = vmatprep.subr.mxu0 0.0
    %590 = vmatpush1.msra.mxu0 0.0
    %591 = vmatprep.subr.mxu0 0.0
    %592 = vmatpush1.msra.mxu0 0.0
    %593 = vmatprep.subr.mxu0 0.0
    %594 = vmatpush1.msra.mxu0 0.0
    %595 = vmatprep.subr.mxu0 0.0
    %596 = vmatpush1.msra.mxu0 0.0
    %597 = vmatprep.subr.mxu0 0.0
    %598 = vmatpush1.msra.mxu0 0.0
    %599 = vmatprep.subr.mxu0 0.0
    %600 = vmatpush1.msra.mxu0 0.0
    %601 = vmatprep.subr.mxu0 0.0
    %602 = vmatpush1.msra.mxu0 0.0
    %603 = vmatprep.subr.mxu0 0.0
    %604 = vmatpush1.msra.mxu0 0.0
    %605 = vmatprep.subr.mxu0 0.0
    %606 = vmatpush1.msra.mxu0 0.0
    %607 = vmatprep.subr.mxu0 0.0
    %608 = vmatpush1.msra.mxu0 0.0
    %609 = vmatprep.subr.mxu0 0.0
    %610 = vmatpush1.msra.mxu0 0.0
    %611 = vmatprep.subr.mxu0 0.0
    %612 = vmatpush1.msra.mxu0 0.0
    %613 = vmatprep.subr.mxu0 0.0
    %614 = vmatpush1.msra.mxu0 0.0
    %615 = vmatprep.subr.mxu0 0.0
    %616 = vmatpush1.msra.mxu0 0.0
    %617 = vmatprep.subr.mxu0 0.0
    %618 = vmatpush1.msra.mxu0 0.0
    %619 = vmatprep.subr.mxu0 0.0
    %620 = vmatpush1.msra.mxu0 0.0
    %621 = vmatprep.subr.mxu0 0.0
    %622 = vmatpush1.msra.mxu0 0.0
    %623 = vmatprep.subr.mxu0 0.0
    %624 = vmatpush1.msra.mxu0 0.0
    %625 = vmatprep.subr.mxu0 0.0
    %626 = vmatpush1.msra.mxu0 0.0
    %627 = vmatprep.subr.mxu0 0.0
    %628 = vmatpush1.msra.mxu0 0.0
    %629 = vmatprep.subr.mxu0 0.0
    %630 = vmatpush1.msra.mxu0 0.0
    %631 = vmatprep.subr.mxu0 0.0
    %632 = vmatpush1.msra.mxu0 0.0
    %633 = vmatprep.subr.mxu0 0.0
    %634 = vmatpush1.msra.mxu0 0.0
    %635 = vmatprep.subr.mxu0 0.0
    %636 = vmatpush1.msra.mxu0 0.0
    %637 = vmatprep.subr.mxu0 0.0
    %638 = vmatpush1.msra.mxu0 0.0
    %639 = vmatprep.subr.mxu0 0.0
    %640 = vmatpush1.msra.mxu0 0.0
    %641 = vmatprep.subr.mxu0 0.0
    %642 = vmatpush1.msra.mxu0 0.0
    %643 = vmatprep.subr.mxu0 0.0
    %644 = vmatpush1.msra.mxu0 0.0
    %645 = vmatprep.mubr.f32.mxu0 0.0
    %646 = vmatmul.mubr.f32.gmra.mrb[0].mxu0 %v579
    %v647 = vpop.f32.mrb[0].mxu0
    %v648 = vadd.f32 0.0, %v647
    %v649 = vpop.f32.mrb[0].mxu0
    %650 = vdwg.mxu0
    %v651 = vadd.f32 %v141, %v648
    %v652 = vmul.f32 %v651, %v30
    %v653 = vxor.u32 %v652, 2147483648
    %v654 = vmul.f32 %v653, 1.442695
    %v655 = vpow.pop %v654
    %v656 = vadd.f32 %v655, 1.0
    %v657 = vrcp.pop %v656
    %v658 = vmul.f32 1.0, %v657
    %v659 = vmul.f32 %v658, 2.0
    %v660 = vsub.f32 %v659, 1.0
    %v661 = vsel %vm29, %v660, %v658
    %v663 = vrot.slane %v568, 6
    %v665 = vmul.f32 %v661, %v663
    %667 = vrot.lane.b32.xlu0 %v661, 96
    %v668 = vpop.permute.xlu0 %667
    %v670 = vmul.f32 %v661, %v668
    %672 = vrot.lane.b32.xlu0 %v670, 16
    %v673 = vpop.permute.xlu0 %672
    %v675 = vadd.f32 %v665, %v673
    %v676 = vtanh.pop %v675
    %678 = vrot.lane.b32.xlu0 %v676, 32
    %v679 = vpop.permute.xlu0 %678
    %v681 = vmul.f32 %v661, %v679
    %683 = vrot.lane.b32.xlu0 %v681, 80
    %v684 = vpop.permute.xlu0 %683
    %v685 = vsel %vm49, %v684, 0
    %687 = vmatprep.subr.mxu0 0.0
    %688 = vmatpush1.msra.mxu0 %v34
    %689 = vmatprep.subr.mxu0 0.0
    %690 = vmatpush1.msra.mxu0 %v35
    %691 = vmatprep.subr.mxu0 0.0
    %692 = vmatpush1.msra.mxu0 0.0
    %693 = vmatprep.subr.mxu0 0.0
    %694 = vmatpush1.msra.mxu0 0.0
    %695 = vmatprep.subr.mxu0 0.0
    %696 = vmatpush1.msra.mxu0 0.0
    %697 = vmatprep.subr.mxu0 0.0
    %698 = vmatpush1.msra.mxu0 0.0
    %699 = vmatprep.subr.mxu0 0.0
    %700 = vmatpush1.msra.mxu0 0.0
    %701 = vmatprep.subr.mxu0 0.0
    %702 = vmatpush1.msra.mxu0 0.0
    %703 = vmatprep.subr.mxu0 0.0
    %704 = vmatpush1.msra.mxu0 0.0
    %705 = vmatprep.subr.mxu0 0.0
    %706 = vmatpush1.msra.mxu0 0.0
    %707 = vmatprep.subr.mxu0 0.0
    %708 = vmatpush1.msra.mxu0 0.0
    %709 = vmatprep.subr.mxu0 0.0
    %710 = vmatpush1.msra.mxu0 0.0
    %711 = vmatprep.subr.mxu0 0.0
    %712 = vmatpush1.msra.mxu0 0.0
    %713 = vmatprep.subr.mxu0 0.0
    %714 = vmatpush1.msra.mxu0 0.0
    %715 = vmatprep.subr.mxu0 0.0
    %716 = vmatpush1.msra.mxu0 0.0
    %717 = vmatprep.subr.mxu0 0.0
    %718 = vmatpush1.msra.mxu0 0.0
    %719 = vmatprep.subr.mxu0 0.0
    %720 = vmatpush1.msra.mxu0 0.0
    %721 = vmatprep.subr.mxu0 0.0
    %722 = vmatpush1.msra.mxu0 0.0
    %723 = vmatprep.subr.mxu0 0.0
    %724 = vmatpush1.msra.mxu0 0.0
    %725 = vmatprep.subr.mxu0 0.0
    %726 = vmatpush1.msra.mxu0 0.0
    %727 = vmatprep.subr.mxu0 0.0
    %728 = vmatpush1.msra.mxu0 0.0
    %729 = vmatprep.subr.mxu0 0.0
    %730 = vmatpush1.msra.mxu0 0.0
    %731 = vmatprep.subr.mxu0 0.0
    %732 = vmatpush1.msra.mxu0 0.0
    %733 = vmatprep.subr.mxu0 0.0
    %734 = vmatpush1.msra.mxu0 0.0
    %735 = vmatprep.subr.mxu0 0.0
    %736 = vmatpush1.msra.mxu0 0.0
    %737 = vmatprep.subr.mxu0 0.0
    %738 = vmatpush1.msra.mxu0 0.0
    %739 = vmatprep.subr.mxu0 0.0
    %740 = vmatpush1.msra.mxu0 0.0
    %741 = vmatprep.subr.mxu0 0.0
    %742 = vmatpush1.msra.mxu0 0.0
    %743 = vmatprep.subr.mxu0 0.0
    %744 = vmatpush1.msra.mxu0 0.0
    %745 = vmatprep.subr.mxu0 0.0
    %746 = vmatpush1.msra.mxu0 0.0
    %747 = vmatprep.subr.mxu0 0.0
    %748 = vmatpush1.msra.mxu0 0.0
    %749 = vmatprep.subr.mxu0 0.0
    %750 = vmatpush1.msra.mxu0 0.0
    %751 = vmatprep.mubr.f32.mxu0 0.0
    %752 = vmatmul.mubr.f32.gmra.mrb[0].mxu0 %v685
    %v753 = vpop.f32.mrb[0].mxu0
    %v754 = vadd.f32 0.0, %v753
    %v755 = vpop.f32.mrb[0].mxu0
    %756 = vdwg.mxu0
    %v758 = vrot.slane %v754, 6
    %v760 = vadd.f32 %v144, %v758
    %v761 = vmul.f32 %v760, %v30
    %v762 = vxor.u32 %v761, 2147483648
    %v763 = vmul.f32 %v762, 1.442695
    %v764 = vpow.pop %v763
    %v765 = vadd.f32 %v764, 1.0
    %v766 = vrcp.pop %v765
    %v767 = vmul.f32 1.0, %v766
    %v768 = vmul.f32 %v767, 2.0
    %v769 = vsub.f32 %v768, 1.0
    %v770 = vsel %vm29, %v769, %v767
    %v772 = vrot.slane %v675, 6
    %v774 = vmul.f32 %v770, %v772
    %776 = vrot.lane.b32.xlu0 %v770, 96
    %v777 = vpop.permute.xlu0 %776
    %v779 = vmul.f32 %v770, %v777
    %781 = vrot.lane.b32.xlu0 %v779, 16
    %v782 = vpop.permute.xlu0 %781
    %v784 = vadd.f32 %v774, %v782
    %v785 = vtanh.pop %v784
    %787 = vrot.lane.b32.xlu0 %v785, 32
    %v788 = vpop.permute.xlu0 %787
    %v790 = vmul.f32 %v770, %v788
    %v792 = vrot.slane %v790, 2
    %793 = vrot.lane.b32.xlu0 %v792, 80
    %v794 = vpop.permute.xlu0 %793
    %v795 = vsel %vm49, %v794, 0
    %797 = vmatprep.subr.mxu0 0.0
    %798 = vmatpush1.msra.mxu0 %v34
    %799 = vmatprep.subr.mxu0 0.0
    %800 = vmatpush1.msra.mxu0 %v35
    %801 = vmatprep.subr.mxu0 0.0
    %802 = vmatpush1.msra.mxu0 0.0
    %803 = vmatprep.subr.mxu0 0.0
    %804 = vmatpush1.msra.mxu0 0.0
    %805 = vmatprep.subr.mxu0 0.0
    %806 = vmatpush1.msra.mxu0 0.0
    %807 = vmatprep.subr.mxu0 0.0
    %808 = vmatpush1.msra.mxu0 0.0
    %809 = vmatprep.subr.mxu0 0.0
    %810 = vmatpush1.msra.mxu0 0.0
    %811 = vmatprep.subr.mxu0 0.0
    %812 = vmatpush1.msra.mxu0 0.0
    %813 = vmatprep.subr.mxu0 0.0
    %814 = vmatpush1.msra.mxu0 0.0
    %815 = vmatprep.subr.mxu0 0.0
    %816 = vmatpush1.msra.mxu0 0.0
    %817 = vmatprep.subr.mxu0 0.0
    %818 = vmatpush1.msra.mxu0 0.0
    %819 = vmatprep.subr.mxu0 0.0
    %820 = vmatpush1.msra.mxu0 0.0
    %821 = vmatprep.subr.mxu0 0.0
    %822 = vmatpush1.msra.mxu0 0.0
    %823 = vmatprep.subr.mxu0 0.0
    %824 = vmatpush1.msra.mxu0 0.0
    %825 = vmatprep.subr.mxu0 0.0
    %826 = vmatpush1.msra.mxu0 0.0
    %827 = vmatprep.subr.mxu0 0.0
    %828 = vmatpush1.msra.mxu0 0.0
    %829 = vmatprep.subr.mxu0 0.0
    %830 = vmatpush1.msra.mxu0 0.0
    %831 = vmatprep.subr.mxu0 0.0
    %832 = vmatpush1.msra.mxu0 0.0
    %833 = vmatprep.subr.mxu0 0.0
    %834 = vmatpush1.msra.mxu0 0.0
    %835 = vmatprep.subr.mxu0 0.0
    %836 = vmatpush1.msra.mxu0 0.0
    %837 = vmatprep.subr.mxu0 0.0
    %838 = vmatpush1.msra.mxu0 0.0
    %839 = vmatprep.subr.mxu0 0.0
    %840 = vmatpush1.msra.mxu0 0.0
    %841 = vmatprep.subr.mxu0 0.0
    %842 = vmatpush1.msra.mxu0 0.0
    %843 = vmatprep.subr.mxu0 0.0
    %844 = vmatpush1.msra.mxu0 0.0
    %845 = vmatprep.subr.mxu0 0.0
    %846 = vmatpush1.msra.mxu0 0.0
    %847 = vmatprep.subr.mxu0 0.0
    %848 = vmatpush1.msra.mxu0 0.0
    %849 = vmatprep.subr.mxu0 0.0
    %850 = vmatpush1.msra.mxu0 0.0
    %851 = vmatprep.subr.mxu0 0.0
    %852 = vmatpush1.msra.mxu0 0.0
    %853 = vmatprep.subr.mxu0 0.0
    %854 = vmatpush1.msra.mxu0 0.0
    %855 = vmatprep.subr.mxu0 0.0
    %856 = vmatpush1.msra.mxu0 0.0
    %857 = vmatprep.subr.mxu0 0.0
    %858 = vmatpush1.msra.mxu0 0.0
    %859 = vmatprep.subr.mxu0 0.0
    %860 = vmatpush1.msra.mxu0 0.0
    %861 = vmatprep.mubr.f32.mxu0 0.0
    %862 = vmatmul.mubr.f32.gmra.mrb[0].mxu0 %v795
    %v863 = vpop.f32.mrb[0].mxu0
    %v864 = vadd.f32 0.0, %v863
    %v865 = vpop.f32.mrb[0].mxu0
    %866 = vdwg.mxu0
    %v868 = vrot.slane %v864, 4
    %v870 = vadd.f32 %v141, %v868
    %v871 = vmul.f32 %v870, %v30
    %v872 = vxor.u32 %v871, 2147483648
    %v873 = vmul.f32 %v872, 1.442695
    %v874 = vpow.pop %v873
    %v875 = vadd.f32 %v874, 1.0
    %v876 = vrcp.pop %v875
    %v877 = vmul.f32 1.0, %v876
    %v878 = vmul.f32 %v877, 2.0
    %v879 = vsub.f32 %v878, 1.0
    %v880 = vsel %vm29, %v879, %v877
    %v882 = vrot.slane %v784, 6
    %v884 = vmul.f32 %v880, %v882
    %886 = vrot.lane.b32.xlu0 %v880, 96
    %v887 = vpop.permute.xlu0 %886
    %v889 = vmul.f32 %v880, %v887
    %891 = vrot.lane.b32.xlu0 %v889, 16
    %v892 = vpop.permute.xlu0 %891
    %v894 = vadd.f32 %v884, %v892
    %v895 = vtanh.pop %v894
    %897 = vrot.lane.b32.xlu0 %v895, 32
    %v898 = vpop.permute.xlu0 %897
    %v900 = vmul.f32 %v880, %v898
    %v902 = vrot.slane %v900, 4
    %903 = vrot.lane.b32.xlu0 %v902, 80
    %v904 = vpop.permute.xlu0 %903
    %v905 = vsel %vm49, %v904, 0
    %907 = vmatprep.subr.mxu0 0.0
    %908 = vmatpush1.msra.mxu0 %v34
    %909 = vmatprep.subr.mxu0 0.0
    %910 = vmatpush1.msra.mxu0 %v35
    %911 = vmatprep.subr.mxu0 0.0
    %912 = vmatpush1.msra.mxu0 0.0
    %913 = vmatprep.subr.mxu0 0.0
    %914 = vmatpush1.msra.mxu0 0.0
    %915 = vmatprep.subr.mxu0 0.0
    %916 = vmatpush1.msra.mxu0 0.0
    %917 = vmatprep.subr.mxu0 0.0
    %918 = vmatpush1.msra.mxu0 0.0
    %919 = vmatprep.subr.mxu0 0.0
    %920 = vmatpush1.msra.mxu0 0.0
    %921 = vmatprep.subr.mxu0 0.0
    %922 = vmatpush1.msra.mxu0 0.0
    %923 = vmatprep.subr.mxu0 0.0
    %924 = vmatpush1.msra.mxu0 0.0
    %925 = vmatprep.subr.mxu0 0.0
    %926 = vmatpush1.msra.mxu0 0.0
    %927 = vmatprep.subr.mxu0 0.0
    %928 = vmatpush1.msra.mxu0 0.0
    %929 = vmatprep.subr.mxu0 0.0
    %930 = vmatpush1.msra.mxu0 0.0
    %931 = vmatprep.subr.mxu0 0.0
    %932 = vmatpush1.msra.mxu0 0.0
    %933 = vmatprep.subr.mxu0 0.0
    %934 = vmatpush1.msra.mxu0 0.0
    %935 = vmatprep.subr.mxu0 0.0
    %936 = vmatpush1.msra.mxu0 0.0
    %937 = vmatprep.subr.mxu0 0.0
    %938 = vmatpush1.msra.mxu0 0.0
    %939 = vmatprep.subr.mxu0 0.0
    %940 = vmatpush1.msra.mxu0 0.0
    %941 = vmatprep.subr.mxu0 0.0
    %942 = vmatpush1.msra.mxu0 0.0
    %943 = vmatprep.subr.mxu0 0.0
    %944 = vmatpush1.msra.mxu0 0.0
    %945 = vmatprep.subr.mxu0 0.0
    %946 = vmatpush1.msra.mxu0 0.0
    %947 = vmatprep.subr.mxu0 0.0
    %948 = vmatpush1.msra.mxu0 0.0
    %949 = vmatprep.subr.mxu0 0.0
    %950 = vmatpush1.msra.mxu0 0.0
    %951 = vmatprep.subr.mxu0 0.0
    %952 = vmatpush1.msra.mxu0 0.0
    %953 = vmatprep.subr.mxu0 0.0
    %954 = vmatpush1.msra.mxu0 0.0
    %955 = vmatprep.subr.mxu0 0.0
    %956 = vmatpush1.msra.mxu0 0.0
    %957 = vmatprep.subr.mxu0 0.0
    %958 = vmatpush1.msra.mxu0 0.0
    %959 = vmatprep.subr.mxu0 0.0
    %960 = vmatpush1.msra.mxu0 0.0
    %961 = vmatprep.subr.mxu0 0.0
    %962 = vmatpush1.msra.mxu0 0.0
    %963 = vmatprep.subr.mxu0 0.0
    %964 = vmatpush1.msra.mxu0 0.0
    %965 = vmatprep.subr.mxu0 0.0
    %966 = vmatpush1.msra.mxu0 0.0
    %967 = vmatprep.subr.mxu0 0.0
    %968 = vmatpush1.msra.mxu0 0.0
    %969 = vmatprep.subr.mxu0 0.0
    %970 = vmatpush1.msra.mxu0 0.0
    %971 = vmatprep.mubr.f32.mxu0 0.0
    %972 = vmatmul.mubr.f32.gmra.mrb[0].mxu0 %v905
    %v973 = vpop.f32.mrb[0].mxu0
    %v974 = vadd.f32 0.0, %v973
    %v975 = vpop.f32.mrb[0].mxu0
    %976 = vdwg.mxu0
    %v978 = vrot.slane %v974, 2
    %v980 = vadd.f32 %v144, %v978
    %v981 = vmul.f32 %v980, %v30
    %v982 = vxor.u32 %v981, 2147483648
    %v983 = vmul.f32 %v982, 1.442695
    %v984 = vpow.pop %v983
    %v985 = vadd.f32 %v984, 1.0
    %v986 = vrcp.pop %v985
    %v987 = vmul.f32 1.0, %v986
    %v988 = vmul.f32 %v987, 2.0
    %v989 = vsub.f32 %v988, 1.0
    %v990 = vsel %vm29, %v989, %v987
    %v992 = vrot.slane %v894, 6
    %v994 = vmul.f32 %v990, %v992
    %996 = vrot.lane.b32.xlu0 %v990, 96
    %v997 = vpop.permute.xlu0 %996
    %v999 = vmul.f32 %v990, %v997
    %1001 = vrot.lane.b32.xlu0 %v999, 16
    %v1002 = vpop.permute.xlu0 %1001
    %v1004 = vadd.f32 %v994, %v1002
    %v1005 = vtanh.pop %v1004
    %1007 = vrot.lane.b32.xlu0 %v1005, 32
    %v1008 = vpop.permute.xlu0 %1007
    %v1010 = vmul.f32 %v990, %v1008
    %vm1011 = vcmask 1041408
    %v1012 = vsel %vm1011, %v245, %v354
    %vm1013 = vcmask 1043456
    %v1014 = vsel %vm1013, %v1012, %v464
    %vm1015 = vcmask 1045504
    %v1016 = vsel %vm1015, %v1014, %v574
    %v1017 = vsel %vm1011, %v681, %v790
    %v1018 = vsel %vm1013, %v1017, %v900
    %v1019 = vsel %vm1015, %v1018, %v1010
    %v1021 = vrot.slane %v1010, 6
    %v1023 = vrot.slane %v900, 2
    %v1025 = vrot.slane %v790, 6
    %v1027 = vrot.slane %v681, 2
    %v1030 = vrot.slane %v464, 2
    %v1032 = vrot.slane %v354, 6
    %v1034 = vrot.slane %v245, 2
    %v1036 = vsel %vm1011, %v1021, %v1023
    %v1037 = vsel %vm1013, %v1036, %v1025
    %v1038 = vsel %vm1015, %v1037, %v1027
    %v1039 = vsel %vm1011, %v576, %v1030
    %v1040 = vsel %vm1013, %v1039, %v1032
    %v1041 = vsel %vm1015, %v1040, %v1034
    %1044 = vrot.lane.b32.xlu0 %v1016, 80
    %v1045 = vpop.permute.xlu0 %1044
    %1046 = vrot.lane.b32.xlu0 %v1019, 80
    %v1047 = vpop.permute.xlu0 %1046
    %1052 = vrot.lane.b32.xlu0 %v1038, 80
    %v1053 = vpop.permute.xlu0 %1052
    %1054 = vrot.lane.b32.xlu0 %v1041, 80
    %v1055 = vpop.permute.xlu0 %1054
    %v1058 = vsel %vm31, %v1045, %v1053
    %v1059 = vsel %vm31, %v1047, %v1055
    %v1060 = vlaneseq
    %v1061 = vshrl.u32 %v1060, 7
    %v1062 = vsub.s32 1, %v1061
    %v1063 = vrot.slane %v42, %v1062
    %v1065 = vsel %vm49, %v1058, 0
    %v1068 = vsel %vm49, %v1059, 0
    %1070 = vmatprep.subr.mxu0 0.0
    %1071 = vmatpush1.msra.mxu0 %v36
    %1072 = vmatprep.subr.mxu0 0.0
    %1073 = vmatpush1.msra.mxu0 %v37
    %1074 = vmatprep.subr.mxu0 0.0
    %1075 = vmatpush1.msra.mxu0 0.0
    %1076 = vmatprep.subr.mxu0 0.0
    %1077 = vmatpush1.msra.mxu0 0.0
    %1078 = vmatprep.subr.mxu0 0.0
    %1079 = vmatpush1.msra.mxu0 0.0
    %1080 = vmatprep.subr.mxu0 0.0
    %1081 = vmatpush1.msra.mxu0 0.0
    %1082 = vmatprep.subr.mxu0 0.0
    %1083 = vmatpush1.msra.mxu0 0.0
    %1084 = vmatprep.subr.mxu0 0.0
    %1085 = vmatpush1.msra.mxu0 0.0
    %1086 = vmatprep.subr.mxu0 0.0
    %1087 = vmatpush1.msra.mxu0 0.0
    %1088 = vmatprep.subr.mxu0 0.0
    %1089 = vmatpush1.msra.mxu0 0.0
    %1090 = vmatprep.subr.mxu0 0.0
    %1091 = vmatpush1.msra.mxu0 0.0
    %1092 = vmatprep.subr.mxu0 0.0
    %1093 = vmatpush1.msra.mxu0 0.0
    %1094 = vmatprep.subr.mxu0 0.0
    %1095 = vmatpush1.msra.mxu0 0.0
    %1096 = vmatprep.subr.mxu0 0.0
    %1097 = vmatpush1.msra.mxu0 0.0
    %1098 = vmatprep.subr.mxu0 0.0
    %1099 = vmatpush1.msra.mxu0 0.0
    %1100 = vmatprep.subr.mxu0 0.0
    %1101 = vmatpush1.msra.mxu0 0.0
    %1102 = vmatprep.subr.mxu0 0.0
    %1103 = vmatpush1.msra.mxu0 0.0
    %1104 = vmatprep.subr.mxu0 0.0
    %1105 = vmatpush1.msra.mxu0 0.0
    %1106 = vmatprep.subr.mxu0 0.0
    %1107 = vmatpush1.msra.mxu0 0.0
    %1108 = vmatprep.subr.mxu0 0.0
    %1109 = vmatpush1.msra.mxu0 0.0
    %1110 = vmatprep.subr.mxu0 0.0
    %1111 = vmatpush1.msra.mxu0 0.0
    %1112 = vmatprep.subr.mxu0 0.0
    %1113 = vmatpush1.msra.mxu0 0.0
    %1114 = vmatprep.subr.mxu0 0.0
    %1115 = vmatpush1.msra.mxu0 0.0
    %1116 = vmatprep.subr.mxu0 0.0
    %1117 = vmatpush1.msra.mxu0 0.0
    %1118 = vmatprep.subr.mxu0 0.0
    %1119 = vmatpush1.msra.mxu0 0.0
    %1120 = vmatprep.subr.mxu0 0.0
    %1121 = vmatpush1.msra.mxu0 0.0
    %1122 = vmatprep.subr.mxu0 0.0
    %1123 = vmatpush1.msra.mxu0 0.0
    %1124 = vmatprep.subr.mxu0 0.0
    %1125 = vmatpush1.msra.mxu0 0.0
    %1126 = vmatprep.subr.mxu0 0.0
    %1127 = vmatpush1.msra.mxu0 0.0
    %1128 = vmatprep.subr.mxu0 0.0
    %1129 = vmatpush1.msra.mxu0 0.0
    %1130 = vmatprep.subr.mxu0 0.0
    %1131 = vmatpush1.msra.mxu0 0.0
    %1132 = vmatprep.subr.mxu0 0.0
    %1133 = vmatpush1.msra.mxu0 0.0
    %1134 = vmatprep.mubr.f32.mxu0 0.0
    %1135 = vmatmul.mubr.f32.gmra.mrb[0].mxu0 %v1065
    %v1136 = vpop.f32.mrb[0].mxu0
    %v1137 = vadd.f32 %v1063, %v1136
    %v1138 = vpop.f32.mrb[0].mxu0
    %1139 = vmatprep.mubr.f32.mxu0 0.0
    %1140 = vmatmul.mubr.f32.gmra.mrb[0].mxu0 %v1068
    %v1141 = vpop.f32.mrb[0].mxu0
    %v1142 = vadd.f32 %v1063, %v1141
    %v1143 = vpop.f32.mrb[0].mxu0
    %1144 = vdwg.mxu0
    %v1146 = vrot.slane %v1142, 6
    %v1148 = vsel %vm26, %v1137, %v1146
    %v1149 = vrot.slane %v1142, 2
    %v1151 = vsel %vm26, %v1137, %v1149
    %v1153 = vrot.slane %v1137, 6
    %v1155 = vsel %vm26, %v1142, %v1153
    %v1156 = vrot.slane %v1137, 2
    %v1158 = vsel %vm26, %v1142, %v1156
    %1159 = vmatprep.subr.mxu0 0.0
    %1160 = vmatpush1.msra.mxu0 %v38
    %1161 = vmatprep.subr.mxu0 0.0
    %1162 = vmatpush1.msra.mxu0 %v39
    %1163 = vmatprep.subr.mxu0 0.0
    %1164 = vmatpush1.msra.mxu0 0.0
    %1165 = vmatprep.subr.mxu0 0.0
    %1166 = vmatpush1.msra.mxu0 0.0
    %1167 = vmatprep.subr.mxu0 0.0
    %1168 = vmatpush1.msra.mxu0 0.0
    %1169 = vmatprep.subr.mxu0 0.0
    %1170 = vmatpush1.msra.mxu0 0.0
    %1171 = vmatprep.subr.mxu0 0.0
    %1172 = vmatpush1.msra.mxu0 0.0
    %1173 = vmatprep.subr.mxu0 0.0
    %1174 = vmatpush1.msra.mxu0 0.0
    %1175 = vmatprep.subr.mxu0 0.0
    %1176 = vmatpush1.msra.mxu0 0.0
    %1177 = vmatprep.subr.mxu0 0.0
    %1178 = vmatpush1.msra.mxu0 0.0
    %1179 = vmatprep.subr.mxu0 0.0
    %1180 = vmatpush1.msra.mxu0 0.0
    %1181 = vmatprep.subr.mxu0 0.0
    %1182 = vmatpush1.msra.mxu0 0.0
    %1183 = vmatprep.subr.mxu0 0.0
    %1184 = vmatpush1.msra.mxu0 0.0
    %1185 = vmatprep.subr.mxu0 0.0
    %1186 = vmatpush1.msra.mxu0 0.0
    %1187 = vmatprep.subr.mxu0 0.0
    %1188 = vmatpush1.msra.mxu0 0.0
    %1189 = vmatprep.subr.mxu0 0.0
    %1190 = vmatpush1.msra.mxu0 0.0
    %1191 = vmatprep.subr.mxu0 0.0
    %1192 = vmatpush1.msra.mxu0 0.0
    %1193 = vmatprep.subr.mxu0 0.0
    %1194 = vmatpush1.msra.mxu0 0.0
    %1195 = vmatprep.subr.mxu0 0.0
    %1196 = vmatpush1.msra.mxu0 0.0
    %1197 = vmatprep.subr.mxu0 0.0
    %1198 = vmatpush1.msra.mxu0 0.0
    %1199 = vmatprep.subr.mxu0 0.0
    %1200 = vmatpush1.msra.mxu0 0.0
    %1201 = vmatprep.subr.mxu0 0.0
    %1202 = vmatpush1.msra.mxu0 0.0
    %1203 = vmatprep.subr.mxu0 0.0
    %1204 = vmatpush1.msra.mxu0 0.0
    %1205 = vmatprep.subr.mxu0 0.0
    %1206 = vmatpush1.msra.mxu0 0.0
    %1207 = vmatprep.subr.mxu0 0.0
    %1208 = vmatpush1.msra.mxu0 0.0
    %1209 = vmatprep.subr.mxu0 0.0
    %1210 = vmatpush1.msra.mxu0 0.0
    %1211 = vmatprep.subr.mxu0 0.0
    %1212 = vmatpush1.msra.mxu0 0.0
    %1213 = vmatprep.subr.mxu0 0.0
    %1214 = vmatpush1.msra.mxu0 0.0
    %1215 = vmatprep.subr.mxu0 0.0
    %1216 = vmatpush1.msra.mxu0 0.0
    %1217 = vmatprep.subr.mxu0 0.0
    %1218 = vmatpush1.msra.mxu0 0.0
    %1219 = vmatprep.subr.mxu0 0.0
    %1220 = vmatpush1.msra.mxu0 0.0
    %1221 = vmatprep.subr.mxu0 0.0
    %1222 = vmatpush1.msra.mxu0 0.0
    %1223 = vmatprep.mubr.f32.mxu0 0.0
    %1224 = vmatmul.mubr.f32.gmra.mrb[0].mxu0 %v146
    %v1225 = vpop.f32.mrb[0].mxu0
    %v1226 = vadd.f32 0.0, %v1225
    %v1227 = vpop.f32.mrb[0].mxu0
    %1228 = vdwg.mxu0
    %v1229 = vadd.f32 %v1148, %v1226
    %v1230 = vmul.f32 %v1229, %v30
    %v1231 = vxor.u32 %v1230, 2147483648
    %v1232 = vmul.f32 %v1231, 1.442695
    %v1233 = vpow.pop %v1232
    %v1234 = vadd.f32 %v1233, 1.0
    %v1235 = vrcp.pop %v1234
    %v1236 = vmul.f32 1.0, %v1235
    %v1237 = vmul.f32 %v1236, 2.0
    %v1238 = vsub.f32 %v1237, 1.0
    %v1239 = vsel %vm29, %v1238, %v1236
    %v1240 = vmul.f32 %v1239, 0.0
    %1242 = vrot.lane.b32.xlu0 %v1239, 96
    %v1243 = vpop.permute.xlu0 %1242
    %v1245 = vmul.f32 %v1239, %v1243
    %1247 = vrot.lane.b32.xlu0 %v1245, 16
    %v1248 = vpop.permute.xlu0 %1247
    %v1250 = vadd.f32 %v1240, %v1248
    %v1251 = vtanh.pop %v1250
    %1253 = vrot.lane.b32.xlu0 %v1251, 32
    %v1254 = vpop.permute.xlu0 %1253
    %v1256 = vmul.f32 %v1239, %v1254
    %1258 = vrot.lane.b32.xlu0 %v1256, 80
    %v1259 = vpop.permute.xlu0 %1258
    %v1260 = vsel %vm49, %v1259, 0
    %1262 = vmatprep.subr.mxu0 0.0
    %1263 = vmatpush1.msra.mxu0 %v38
    %1264 = vmatprep.subr.mxu0 0.0
    %1265 = vmatpush1.msra.mxu0 %v39
    %1266 = vmatprep.subr.mxu0 0.0
    %1267 = vmatpush1.msra.mxu0 0.0
    %1268 = vmatprep.subr.mxu0 0.0
    %1269 = vmatpush1.msra.mxu0 0.0
    %1270 = vmatprep.subr.mxu0 0.0
    %1271 = vmatpush1.msra.mxu0 0.0
    %1272 = vmatprep.subr.mxu0 0.0
    %1273 = vmatpush1.msra.mxu0 0.0
    %1274 = vmatprep.subr.mxu0 0.0
    %1275 = vmatpush1.msra.mxu0 0.0
    %1276 = vmatprep.subr.mxu0 0.0
    %1277 = vmatpush1.msra.mxu0 0.0
    %1278 = vmatprep.subr.mxu0 0.0
    %1279 = vmatpush1.msra.mxu0 0.0
    %1280 = vmatprep.subr.mxu0 0.0
    %1281 = vmatpush1.msra.mxu0 0.0
    %1282 = vmatprep.subr.mxu0 0.0
    %1283 = vmatpush1.msra.mxu0 0.0
    %1284 = vmatprep.subr.mxu0 0.0
    %1285 = vmatpush1.msra.mxu0 0.0
    %1286 = vmatprep.subr.mxu0 0.0
    %1287 = vmatpush1.msra.mxu0 0.0
    %1288 = vmatprep.subr.mxu0 0.0
    %1289 = vmatpush1.msra.mxu0 0.0
    %1290 = vmatprep.subr.mxu0 0.0
    %1291 = vmatpush1.msra.mxu0 0.0
    %1292 = vmatprep.subr.mxu0 0.0
    %1293 = vmatpush1.msra.mxu0 0.0
    %1294 = vmatprep.subr.mxu0 0.0
    %1295 = vmatpush1.msra.mxu0 0.0
    %1296 = vmatprep.subr.mxu0 0.0
    %1297 = vmatpush1.msra.mxu0 0.0
    %1298 = vmatprep.subr.mxu0 0.0
    %1299 = vmatpush1.msra.mxu0 0.0
    %1300 = vmatprep.subr.mxu0 0.0
    %1301 = vmatpush1.msra.mxu0 0.0
    %1302 = vmatprep.subr.mxu0 0.0
    %1303 = vmatpush1.msra.mxu0 0.0
    %1304 = vmatprep.subr.mxu0 0.0
    %1305 = vmatpush1.msra.mxu0 0.0
    %1306 = vmatprep.subr.mxu0 0.0
    %1307 = vmatpush1.msra.mxu0 0.0
    %1308 = vmatprep.subr.mxu0 0.0
    %1309 = vmatpush1.msra.mxu0 0.0
    %1310 = vmatprep.subr.mxu0 0.0
    %1311 = vmatpush1.msra.mxu0 0.0
    %1312 = vmatprep.subr.mxu0 0.0
    %1313 = vmatpush1.msra.mxu0 0.0
    %1314 = vmatprep.subr.mxu0 0.0
    %1315 = vmatpush1.msra.mxu0 0.0
    %1316 = vmatprep.subr.mxu0 0.0
    %1317 = vmatpush1.msra.mxu0 0.0
    %1318 = vmatprep.subr.mxu0 0.0
    %1319 = vmatpush1.msra.mxu0 0.0
    %1320 = vmatprep.subr.mxu0 0.0
    %1321 = vmatpush1.msra.mxu0 0.0
    %1322 = vmatprep.subr.mxu0 0.0
    %1323 = vmatpush1.msra.mxu0 0.0
    %1324 = vmatprep.subr.mxu0 0.0
    %1325 = vmatpush1.msra.mxu0 0.0
    %1326 = vmatprep.mubr.f32.mxu0 0.0
    %1327 = vmatmul.mubr.f32.gmra.mrb[0].mxu0 %v1260
    %v1328 = vpop.f32.mrb[0].mxu0
    %v1329 = vadd.f32 0.0, %v1328
    %v1330 = vpop.f32.mrb[0].mxu0
    %1331 = vdwg.mxu0
    %v1333 = vrot.slane %v1329, 6
    %v1335 = vadd.f32 %v1151, %v1333
    %v1336 = vmul.f32 %v1335, %v30
    %v1337 = vxor.u32 %v1336, 2147483648
    %v1338 = vmul.f32 %v1337, 1.442695
    %v1339 = vpow.pop %v1338
    %v1340 = vadd.f32 %v1339, 1.0
    %v1341 = vrcp.pop %v1340
    %v1342 = vmul.f32 1.0, %v1341
    %v1343 = vmul.f32 %v1342, 2.0
    %v1344 = vsub.f32 %v1343, 1.0
    %v1345 = vsel %vm29, %v1344, %v1342
    %v1347 = vrot.slane %v1250, 6
    %v1349 = vmul.f32 %v1345, %v1347
    %1351 = vrot.lane.b32.xlu0 %v1345, 96
    %v1352 = vpop.permute.xlu0 %1351
    %v1354 = vmul.f32 %v1345, %v1352
    %1356 = vrot.lane.b32.xlu0 %v1354, 16
    %v1357 = vpop.permute.xlu0 %1356
    %v1359 = vadd.f32 %v1349, %v1357
    %v1360 = vtanh.pop %v1359
    %1362 = vrot.lane.b32.xlu0 %v1360, 32
    %v1363 = vpop.permute.xlu0 %1362
    %v1365 = vmul.f32 %v1345, %v1363
    %v1367 = vrot.slane %v1365, 2
    %1368 = vrot.lane.b32.xlu0 %v1367, 80
    %v1369 = vpop.permute.xlu0 %1368
    %v1370 = vsel %vm49, %v1369, 0
    %1372 = vmatprep.subr.mxu0 0.0
    %1373 = vmatpush1.msra.mxu0 %v38
    %1374 = vmatprep.subr.mxu0 0.0
    %1375 = vmatpush1.msra.mxu0 %v39
    %1376 = vmatprep.subr.mxu0 0.0
    %1377 = vmatpush1.msra.mxu0 0.0
    %1378 = vmatprep.subr.mxu0 0.0
    %1379 = vmatpush1.msra.mxu0 0.0
    %1380 = vmatprep.subr.mxu0 0.0
    %1381 = vmatpush1.msra.mxu0 0.0
    %1382 = vmatprep.subr.mxu0 0.0
    %1383 = vmatpush1.msra.mxu0 0.0
    %1384 = vmatprep.subr.mxu0 0.0
    %1385 = vmatpush1.msra.mxu0 0.0
    %1386 = vmatprep.subr.mxu0 0.0
    %1387 = vmatpush1.msra.mxu0 0.0
    %1388 = vmatprep.subr.mxu0 0.0
    %1389 = vmatpush1.msra.mxu0 0.0
    %1390 = vmatprep.subr.mxu0 0.0
    %1391 = vmatpush1.msra.mxu0 0.0
    %1392 = vmatprep.subr.mxu0 0.0
    %1393 = vmatpush1.msra.mxu0 0.0
    %1394 = vmatprep.subr.mxu0 0.0
    %1395 = vmatpush1.msra.mxu0 0.0
    %1396 = vmatprep.subr.mxu0 0.0
    %1397 = vmatpush1.msra.mxu0 0.0
    %1398 = vmatprep.subr.mxu0 0.0
    %1399 = vmatpush1.msra.mxu0 0.0
    %1400 = vmatprep.subr.mxu0 0.0
    %1401 = vmatpush1.msra.mxu0 0.0
    %1402 = vmatprep.subr.mxu0 0.0
    %1403 = vmatpush1.msra.mxu0 0.0
    %1404 = vmatprep.subr.mxu0 0.0
    %1405 = vmatpush1.msra.mxu0 0.0
    %1406 = vmatprep.subr.mxu0 0.0
    %1407 = vmatpush1.msra.mxu0 0.0
    %1408 = vmatprep.subr.mxu0 0.0
    %1409 = vmatpush1.msra.mxu0 0.0
    %1410 = vmatprep.subr.mxu0 0.0
    %1411 = vmatpush1.msra.mxu0 0.0
    %1412 = vmatprep.subr.mxu0 0.0
    %1413 = vmatpush1.msra.mxu0 0.0
    %1414 = vmatprep.subr.mxu0 0.0
    %1415 = vmatpush1.msra.mxu0 0.0
    %1416 = vmatprep.subr.mxu0 0.0
    %1417 = vmatpush1.msra.mxu0 0.0
    %1418 = vmatprep.subr.mxu0 0.0
    %1419 = vmatpush1.msra.mxu0 0.0
    %1420 = vmatprep.subr.mxu0 0.0
    %1421 = vmatpush1.msra.mxu0 0.0
    %1422 = vmatprep.subr.mxu0 0.0
    %1423 = vmatpush1.msra.mxu0 0.0
    %1424 = vmatprep.subr.mxu0 0.0
    %1425 = vmatpush1.msra.mxu0 0.0
    %1426 = vmatprep.subr.mxu0 0.0
    %1427 = vmatpush1.msra.mxu0 0.0
    %1428 = vmatprep.subr.mxu0 0.0
    %1429 = vmatpush1.msra.mxu0 0.0
    %1430 = vmatprep.subr.mxu0 0.0
    %1431 = vmatpush1.msra.mxu0 0.0
    %1432 = vmatprep.subr.mxu0 0.0
    %1433 = vmatpush1.msra.mxu0 0.0
    %1434 = vmatprep.subr.mxu0 0.0
    %1435 = vmatpush1.msra.mxu0 0.0
    %1436 = vmatprep.mubr.f32.mxu0 0.0
    %1437 = vmatmul.mubr.f32.gmra.mrb[0].mxu0 %v1370
    %v1438 = vpop.f32.mrb[0].mxu0
    %v1439 = vadd.f32 0.0, %v1438
    %v1440 = vpop.f32.mrb[0].mxu0
    %1441 = vdwg.mxu0
    %v1443 = vrot.slane %v1439, 4
    %v1445 = vadd.f32 %v1148, %v1443
    %v1446 = vmul.f32 %v1445, %v30
    %v1447 = vxor.u32 %v1446, 2147483648
    %v1448 = vmul.f32 %v1447, 1.442695
    %v1449 = vpow.pop %v1448
    %v1450 = vadd.f32 %v1449, 1.0
    %v1451 = vrcp.pop %v1450
    %v1452 = vmul.f32 1.0, %v1451
    %v1453 = vmul.f32 %v1452, 2.0
    %v1454 = vsub.f32 %v1453, 1.0
    %v1455 = vsel %vm29, %v1454, %v1452
    %v1457 = vrot.slane %v1359, 6
    %v1459 = vmul.f32 %v1455, %v1457
    %1461 = vrot.lane.b32.xlu0 %v1455, 96
    %v1462 = vpop.permute.xlu0 %1461
    %v1464 = vmul.f32 %v1455, %v1462
    %1466 = vrot.lane.b32.xlu0 %v1464, 16
    %v1467 = vpop.permute.xlu0 %1466
    %v1469 = vadd.f32 %v1459, %v1467
    %v1470 = vtanh.pop %v1469
    %1472 = vrot.lane.b32.xlu0 %v1470, 32
    %v1473 = vpop.permute.xlu0 %1472
    %v1475 = vmul.f32 %v1455, %v1473
    %v1477 = vrot.slane %v1475, 4
    %1478 = vrot.lane.b32.xlu0 %v1477, 80
    %v1479 = vpop.permute.xlu0 %1478
    %v1480 = vsel %vm49, %v1479, 0
    %1482 = vmatprep.subr.mxu0 0.0
    %1483 = vmatpush1.msra.mxu0 %v38
    %1484 = vmatprep.subr.mxu0 0.0
    %1485 = vmatpush1.msra.mxu0 %v39
    %1486 = vmatprep.subr.mxu0 0.0
    %1487 = vmatpush1.msra.mxu0 0.0
    %1488 = vmatprep.subr.mxu0 0.0
    %1489 = vmatpush1.msra.mxu0 0.0
    %1490 = vmatprep.subr.mxu0 0.0
    %1491 = vmatpush1.msra.mxu0 0.0
    %1492 = vmatprep.subr.mxu0 0.0
    %1493 = vmatpush1.msra.mxu0 0.0
    %1494 = vmatprep.subr.mxu0 0.0
    %1495 = vmatpush1.msra.mxu0 0.0
    %1496 = vmatprep.subr.mxu0 0.0
    %1497 = vmatpush1.msra.mxu0 0.0
    %1498 = vmatprep.subr.mxu0 0.0
    %1499 = vmatpush1.msra.mxu0 0.0
    %1500 = vmatprep.subr.mxu0 0.0
    %1501 = vmatpush1.msra.mxu0 0.0
    %1502 = vmatprep.subr.mxu0 0.0
    %1503 = vmatpush1.msra.mxu0 0.0
    %1504 = vmatprep.subr.mxu0 0.0
    %1505 = vmatpush1.msra.mxu0 0.0
    %1506 = vmatprep.subr.mxu0 0.0
    %1507 = vmatpush1.msra.mxu0 0.0
    %1508 = vmatprep.subr.mxu0 0.0
    %1509 = vmatpush1.msra.mxu0 0.0
    %1510 = vmatprep.subr.mxu0 0.0
    %1511 = vmatpush1.msra.mxu0 0.0
    %1512 = vmatprep.subr.mxu0 0.0
    %1513 = vmatpush1.msra.mxu0 0.0
    %1514 = vmatprep.subr.mxu0 0.0
    %1515 = vmatpush1.msra.mxu0 0.0
    %1516 = vmatprep.subr.mxu0 0.0
    %1517 = vmatpush1.msra.mxu0 0.0
    %1518 = vmatprep.subr.mxu0 0.0
    %1519 = vmatpush1.msra.mxu0 0.0
    %1520 = vmatprep.subr.mxu0 0.0
    %1521 = vmatpush1.msra.mxu0 0.0
    %1522 = vmatprep.subr.mxu0 0.0
    %1523 = vmatpush1.msra.mxu0 0.0
    %1524 = vmatprep.subr.mxu0 0.0
    %1525 = vmatpush1.msra.mxu0 0.0
    %1526 = vmatprep.subr.mxu0 0.0
    %1527 = vmatpush1.msra.mxu0 0.0
    %1528 = vmatprep.subr.mxu0 0.0
    %1529 = vmatpush1.msra.mxu0 0.0
    %1530 = vmatprep.subr.mxu0 0.0
    %1531 = vmatpush1.msra.mxu0 0.0
    %1532 = vmatprep.subr.mxu0 0.0
    %1533 = vmatpush1.msra.mxu0 0.0
    %1534 = vmatprep.subr.mxu0 0.0
    %1535 = vmatpush1.msra.mxu0 0.0
    %1536 = vmatprep.subr.mxu0 0.0
    %1537 = vmatpush1.msra.mxu0 0.0
    %1538 = vmatprep.subr.mxu0 0.0
    %1539 = vmatpush1.msra.mxu0 0.0
    %1540 = vmatprep.subr.mxu0 0.0
    %1541 = vmatpush1.msra.mxu0 0.0
    %1542 = vmatprep.subr.mxu0 0.0
    %1543 = vmatpush1.msra.mxu0 0.0
    %1544 = vmatprep.subr.mxu0 0.0
    %1545 = vmatpush1.msra.mxu0 0.0
    %1546 = vmatprep.mubr.f32.mxu0 0.0
    %1547 = vmatmul.mubr.f32.gmra.mrb[0].mxu0 %v1480
    %v1548 = vpop.f32.mrb[0].mxu0
    %v1549 = vadd.f32 0.0, %v1548
    %v1550 = vpop.f32.mrb[0].mxu0
    %1551 = vdwg.mxu0
    %v1553 = vrot.slane %v1549, 2
    %v1555 = vadd.f32 %v1151, %v1553
    %v1556 = vmul.f32 %v1555, %v30
    %v1557 = vxor.u32 %v1556, 2147483648
    %v1558 = vmul.f32 %v1557, 1.442695
    %v1559 = vpow.pop %v1558
    %v1560 = vadd.f32 %v1559, 1.0
    %v1561 = vrcp.pop %v1560
    %v1562 = vmul.f32 1.0, %v1561
    %v1563 = vmul.f32 %v1562, 2.0
    %v1564 = vsub.f32 %v1563, 1.0
    %v1565 = vsel %vm29, %v1564, %v1562
    %v1567 = vrot.slane %v1469, 6
    %v1569 = vmul.f32 %v1565, %v1567
    %1571 = vrot.lane.b32.xlu0 %v1565, 96
    %v1572 = vpop.permute.xlu0 %1571
    %v1574 = vmul.f32 %v1565, %v1572
    %1576 = vrot.lane.b32.xlu0 %v1574, 16
    %v1577 = vpop.permute.xlu0 %1576
    %v1579 = vadd.f32 %v1569, %v1577
    %v1580 = vtanh.pop %v1579
    %1582 = vrot.lane.b32.xlu0 %v1580, 32
    %v1583 = vpop.permute.xlu0 %1582
    %v1585 = vmul.f32 %v1565, %v1583
    %v1587 = vrot.slane %v1585, 6
    %1588 = vrot.lane.b32.xlu0 %v1587, 80
    %v1589 = vpop.permute.xlu0 %1588
    %v1590 = vsel %vm49, %v1589, 0
    %1592 = vmatprep.subr.mxu0 0.0
    %1593 = vmatpush1.msra.mxu0 %v38
    %1594 = vmatprep.subr.mxu0 0.0
    %1595 = vmatpush1.msra.mxu0 %v39
    %1596 = vmatprep.subr.mxu0 0.0
    %1597 = vmatpush1.msra.mxu0 0.0
    %1598 = vmatprep.subr.mxu0 0.0
    %1599 = vmatpush1.msra.mxu0 0.0
    %1600 = vmatprep.subr.mxu0 0.0
    %1601 = vmatpush1.msra.mxu0 0.0
    %1602 = vmatprep.subr.mxu0 0.0
    %1603 = vmatpush1.msra.mxu0 0.0
    %1604 = vmatprep.subr.mxu0 0.0
    %1605 = vmatpush1.msra.mxu0 0.0
    %1606 = vmatprep.subr.mxu0 0.0
    %1607 = vmatpush1.msra.mxu0 0.0
    %1608 = vmatprep.subr.mxu0 0.0
    %1609 = vmatpush1.msra.mxu0 0.0
    %1610 = vmatprep.subr.mxu0 0.0
    %1611 = vmatpush1.msra.mxu0 0.0
    %1612 = vmatprep.subr.mxu0 0.0
    %1613 = vmatpush1.msra.mxu0 0.0
    %1614 = vmatprep.subr.mxu0 0.0
    %1615 = vmatpush1.msra.mxu0 0.0
    %1616 = vmatprep.subr.mxu0 0.0
    %1617 = vmatpush1.msra.mxu0 0.0
    %1618 = vmatprep.subr.mxu0 0.0
    %1619 = vmatpush1.msra.mxu0 0.0
    %1620 = vmatprep.subr.mxu0 0.0
    %1621 = vmatpush1.msra.mxu0 0.0
    %1622 = vmatprep.subr.mxu0 0.0
    %1623 = vmatpush1.msra.mxu0 0.0
    %1624 = vmatprep.subr.mxu0 0.0
    %1625 = vmatpush1.msra.mxu0 0.0
    %1626 = vmatprep.subr.mxu0 0.0
    %1627 = vmatpush1.msra.mxu0 0.0
    %1628 = vmatprep.subr.mxu0 0.0
    %1629 = vmatpush1.msra.mxu0 0.0
    %1630 = vmatprep.subr.mxu0 0.0
    %1631 = vmatpush1.msra.mxu0 0.0
    %1632 = vmatprep.subr.mxu0 0.0
    %1633 = vmatpush1.msra.mxu0 0.0
    %1634 = vmatprep.subr.mxu0 0.0
    %1635 = vmatpush1.msra.mxu0 0.0
    %1636 = vmatprep.subr.mxu0 0.0
    %1637 = vmatpush1.msra.mxu0 0.0
    %1638 = vmatprep.subr.mxu0 0.0
    %1639 = vmatpush1.msra.mxu0 0.0
    %1640 = vmatprep.subr.mxu0 0.0
    %1641 = vmatpush1.msra.mxu0 0.0
    %1642 = vmatprep.subr.mxu0 0.0
    %1643 = vmatpush1.msra.mxu0 0.0
    %1644 = vmatprep.subr.mxu0 0.0
    %1645 = vmatpush1.msra.mxu0 0.0
    %1646 = vmatprep.subr.mxu0 0.0
    %1647 = vmatpush1.msra.mxu0 0.0
    %1648 = vmatprep.subr.mxu0 0.0
    %1649 = vmatpush1.msra.mxu0 0.0
    %1650 = vmatprep.subr.mxu0 0.0
    %1651 = vmatpush1.msra.mxu0 0.0
    %1652 = vmatprep.subr.mxu0 0.0
    %1653 = vmatpush1.msra.mxu0 0.0
    %1654 = vmatprep.subr.mxu0 0.0
    %1655 = vmatpush1.msra.mxu0 0.0
    %1656 = vmatprep.mubr.f32.mxu0 0.0
    %1657 = vmatmul.mubr.f32.gmra.mrb[0].mxu0 %v1590
    %v1658 = vpop.f32.mrb[0].mxu0
    %v1659 = vadd.f32 0.0, %v1658
    %v1660 = vpop.f32.mrb[0].mxu0
    %1661 = vdwg.mxu0
    %v1662 = vadd.f32 %v1155, %v1659
    %v1663 = vmul.f32 %v1662, %v30
    %v1664 = vxor.u32 %v1663, 2147483648
    %v1665 = vmul.f32 %v1664, 1.442695
    %v1666 = vpow.pop %v1665
    %v1667 = vadd.f32 %v1666, 1.0
    %v1668 = vrcp.pop %v1667
    %v1669 = vmul.f32 1.0, %v1668
    %v1670 = vmul.f32 %v1669, 2.0
    %v1671 = vsub.f32 %v1670, 1.0
    %v1672 = vsel %vm29, %v1671, %v1669
    %v1674 = vrot.slane %v1579, 6
    %v1676 = vmul.f32 %v1672, %v1674
    %1678 = vrot.lane.b32.xlu0 %v1672, 96
    %v1679 = vpop.permute.xlu0 %1678
    %v1681 = vmul.f32 %v1672, %v1679
    %1683 = vrot.lane.b32.xlu0 %v1681, 16
    %v1684 = vpop.permute.xlu0 %1683
    %v1686 = vadd.f32 %v1676, %v1684
    %v1687 = vtanh.pop %v1686
    %1689 = vrot.lane.b32.xlu0 %v1687, 32
    %v1690 = vpop.permute.xlu0 %1689
    %v1692 = vmul.f32 %v1672, %v1690
    %1694 = vrot.lane.b32.xlu0 %v1692, 80
    %v1695 = vpop.permute.xlu0 %1694
    %v1696 = vsel %vm49, %v1695, 0
    %1698 = vmatprep.subr.mxu0 0.0
    %1699 = vmatpush1.msra.mxu0 %v38
    %1700 = vmatprep.subr.mxu0 0.0
    %1701 = vmatpush1.msra.mxu0 %v39
    %1702 = vmatprep.subr.mxu0 0.0
    %1703 = vmatpush1.msra.mxu0 0.0
    %1704 = vmatprep.subr.mxu0 0.0
    %1705 = vmatpush1.msra.mxu0 0.0
    %1706 = vmatprep.subr.mxu0 0.0
    %1707 = vmatpush1.msra.mxu0 0.0
    %1708 = vmatprep.subr.mxu0 0.0
    %1709 = vmatpush1.msra.mxu0 0.0
    %1710 = vmatprep.subr.mxu0 0.0
    %1711 = vmatpush1.msra.mxu0 0.0
    %1712 = vmatprep.subr.mxu0 0.0
    %1713 = vmatpush1.msra.mxu0 0.0
    %1714 = vmatprep.subr.mxu0 0.0
    %1715 = vmatpush1.msra.mxu0 0.0
    %1716 = vmatprep.subr.mxu0 0.0
    %1717 = vmatpush1.msra.mxu0 0.0
    %1718 = vmatprep.subr.mxu0 0.0
    %1719 = vmatpush1.msra.mxu0 0.0
    %1720 = vmatprep.subr.mxu0 0.0
    %1721 = vmatpush1.msra.mxu0 0.0
    %1722 = vmatprep.subr.mxu0 0.0
    %1723 = vmatpush1.msra.mxu0 0.0
    %1724 = vmatprep.subr.mxu0 0.0
    %1725 = vmatpush1.msra.mxu0 0.0
    %1726 = vmatprep.subr.mxu0 0.0
    %1727 = vmatpush1.msra.mxu0 0.0
    %1728 = vmatprep.subr.mxu0 0.0
    %1729 = vmatpush1.msra.mxu0 0.0
    %1730 = vmatprep.subr.mxu0 0.0
    %1731 = vmatpush1.msra.mxu0 0.0
    %1732 = vmatprep.subr.mxu0 0.0
    %1733 = vmatpush1.msra.mxu0 0.0
    %1734 = vmatprep.subr.mxu0 0.0
    %1735 = vmatpush1.msra.mxu0 0.0
    %1736 = vmatprep.subr.mxu0 0.0
    %1737 = vmatpush1.msra.mxu0 0.0
    %1738 = vmatprep.subr.mxu0 0.0
    %1739 = vmatpush1.msra.mxu0 0.0
    %1740 = vmatprep.subr.mxu0 0.0
    %1741 = vmatpush1.msra.mxu0 0.0
    %1742 = vmatprep.subr.mxu0 0.0
    %1743 = vmatpush1.msra.mxu0 0.0
    %1744 = vmatprep.subr.mxu0 0.0
    %1745 = vmatpush1.msra.mxu0 0.0
    %1746 = vmatprep.subr.mxu0 0.0
    %1747 = vmatpush1.msra.mxu0 0.0
    %1748 = vmatprep.subr.mxu0 0.0
    %1749 = vmatpush1.msra.mxu0 0.0
    %1750 = vmatprep.subr.mxu0 0.0
    %1751 = vmatpush1.msra.mxu0 0.0
    %1752 = vmatprep.subr.mxu0 0.0
    %1753 = vmatpush1.msra.mxu0 0.0
    %1754 = vmatprep.subr.mxu0 0.0
    %1755 = vmatpush1.msra.mxu0 0.0
    %1756 = vmatprep.subr.mxu0 0.0
    %1757 = vmatpush1.msra.mxu0 0.0
    %1758 = vmatprep.subr.mxu0 0.0
    %1759 = vmatpush1.msra.mxu0 0.0
    %1760 = vmatprep.subr.mxu0 0.0
    %1761 = vmatpush1.msra.mxu0 0.0
    %1762 = vmatprep.mubr.f32.mxu0 0.0
    %1763 = vmatmul.mubr.f32.gmra.mrb[0].mxu0 %v1696
    %v1764 = vpop.f32.mrb[0].mxu0
    %v1765 = vadd.f32 0.0, %v1764
    %v1766 = vpop.f32.mrb[0].mxu0
    %1767 = vdwg.mxu0
    %v1769 = vrot.slane %v1765, 6
    %v1771 = vadd.f32 %v1158, %v1769
    %v1772 = vmul.f32 %v1771, %v30
    %v1773 = vxor.u32 %v1772, 2147483648
    %v1774 = vmul.f32 %v1773, 1.442695
    %v1775 = vpow.pop %v1774
    %v1776 = vadd.f32 %v1775, 1.0
    %v1777 = vrcp.pop %v1776
    %v1778 = vmul.f32 1.0, %v1777
    %v1779 = vmul.f32 %v1778, 2.0
    %v1780 = vsub.f32 %v1779, 1.0
    %v1781 = vsel %vm29, %v1780, %v1778
    %v1783 = vrot.slane %v1686, 6
    %v1785 = vmul.f32 %v1781, %v1783
    %1787 = vrot.lane.b32.xlu0 %v1781, 96
    %v1788 = vpop.permute.xlu0 %1787
    %v1790 = vmul.f32 %v1781, %v1788
    %1792 = vrot.lane.b32.xlu0 %v1790, 16
    %v1793 = vpop.permute.xlu0 %1792
    %v1795 = vadd.f32 %v1785, %v1793
    %v1796 = vtanh.pop %v1795
    %1798 = vrot.lane.b32.xlu0 %v1796, 32
    %v1799 = vpop.permute.xlu0 %1798
    %v1801 = vmul.f32 %v1781, %v1799
    %v1803 = vrot.slane %v1801, 2
    %1804 = vrot.lane.b32.xlu0 %v1803, 80
    %v1805 = vpop.permute.xlu0 %1804
    %v1806 = vsel %vm49, %v1805, 0
    %1808 = vmatprep.subr.mxu0 0.0
    %1809 = vmatpush1.msra.mxu0 %v38
    %1810 = vmatprep.subr.mxu0 0.0
    %1811 = vmatpush1.msra.mxu0 %v39
    %1812 = vmatprep.subr.mxu0 0.0
    %1813 = vmatpush1.msra.mxu0 0.0
    %1814 = vmatprep.subr.mxu0 0.0
    %1815 = vmatpush1.msra.mxu0 0.0
    %1816 = vmatprep.subr.mxu0 0.0
    %1817 = vmatpush1.msra.mxu0 0.0
    %1818 = vmatprep.subr.mxu0 0.0
    %1819 = vmatpush1.msra.mxu0 0.0
    %1820 = vmatprep.subr.mxu0 0.0
    %1821 = vmatpush1.msra.mxu0 0.0
    %1822 = vmatprep.subr.mxu0 0.0
    %1823 = vmatpush1.msra.mxu0 0.0
    %1824 = vmatprep.subr.mxu0 0.0
    %1825 = vmatpush1.msra.mxu0 0.0
    %1826 = vmatprep.subr.mxu0 0.0
    %1827 = vmatpush1.msra.mxu0 0.0
    %1828 = vmatprep.subr.mxu0 0.0
    %1829 = vmatpush1.msra.mxu0 0.0
    %1830 = vmatprep.subr.mxu0 0.0
    %1831 = vmatpush1.msra.mxu0 0.0
    %1832 = vmatprep.subr.mxu0 0.0
    %1833 = vmatpush1.msra.mxu0 0.0
    %1834 = vmatprep.subr.mxu0 0.0
    %1835 = vmatpush1.msra.mxu0 0.0
    %1836 = vmatprep.subr.mxu0 0.0
    %1837 = vmatpush1.msra.mxu0 0.0
    %1838 = vmatprep.subr.mxu0 0.0
    %1839 = vmatpush1.msra.mxu0 0.0
    %1840 = vmatprep.subr.mxu0 0.0
    %1841 = vmatpush1.msra.mxu0 0.0
    %1842 = vmatprep.subr.mxu0 0.0
    %1843 = vmatpush1.msra.mxu0 0.0
    %1844 = vmatprep.subr.mxu0 0.0
    %1845 = vmatpush1.msra.mxu0 0.0
    %1846 = vmatprep.subr.mxu0 0.0
    %1847 = vmatpush1.msra.mxu0 0.0
    %1848 = vmatprep.subr.mxu0 0.0
    %1849 = vmatpush1.msra.mxu0 0.0
    %1850 = vmatprep.subr.mxu0 0.0
    %1851 = vmatpush1.msra.mxu0 0.0
    %1852 = vmatprep.subr.mxu0 0.0
    %1853 = vmatpush1.msra.mxu0 0.0
    %1854 = vmatprep.subr.mxu0 0.0
    %1855 = vmatpush1.msra.mxu0 0.0
    %1856 = vmatprep.subr.mxu0 0.0
    %1857 = vmatpush1.msra.mxu0 0.0
    %1858 = vmatprep.subr.mxu0 0.0
    %1859 = vmatpush1.msra.mxu0 0.0
    %1860 = vmatprep.subr.mxu0 0.0
    %1861 = vmatpush1.msra.mxu0 0.0
    %1862 = vmatprep.subr.mxu0 0.0
    %1863 = vmatpush1.msra.mxu0 0.0
    %1864 = vmatprep.subr.mxu0 0.0
    %1865 = vmatpush1.msra.mxu0 0.0
    %1866 = vmatprep.subr.mxu0 0.0
    %1867 = vmatpush1.msra.mxu0 0.0
    %1868 = vmatprep.subr.mxu0 0.0
    %1869 = vmatpush1.msra.mxu0 0.0
    %1870 = vmatprep.subr.mxu0 0.0
    %1871 = vmatpush1.msra.mxu0 0.0
    %1872 = vmatprep.mubr.f32.mxu0 0.0
    %1873 = vmatmul.mubr.f32.gmra.mrb[0].mxu0 %v1806
    %v1874 = vpop.f32.mrb[0].mxu0
    %v1875 = vadd.f32 0.0, %v1874
    %v1876 = vpop.f32.mrb[0].mxu0
    %1877 = vdwg.mxu0
    %v1879 = vrot.slane %v1875, 4
    %v1881 = vadd.f32 %v1155, %v1879
    %v1882 = vmul.f32 %v1881, %v30
    %v1883 = vxor.u32 %v1882, 2147483648
    %v1884 = vmul.f32 %v1883, 1.442695
    %v1885 = vpow.pop %v1884
    %v1886 = vadd.f32 %v1885, 1.0
    %v1887 = vrcp.pop %v1886
    %v1888 = vmul.f32 1.0, %v1887
    %v1889 = vmul.f32 %v1888, 2.0
    %v1890 = vsub.f32 %v1889, 1.0
    %v1891 = vsel %vm29, %v1890, %v1888
    %v1893 = vrot.slane %v1795, 6
    %v1895 = vmul.f32 %v1891, %v1893
    %1897 = vrot.lane.b32.xlu0 %v1891, 96
    %v1898 = vpop.permute.xlu0 %1897
    %v1900 = vmul.f32 %v1891, %v1898
    %1902 = vrot.lane.b32.xlu0 %v1900, 16
    %v1903 = vpop.permute.xlu0 %1902
    %v1905 = vadd.f32 %v1895, %v1903
    %v1906 = vtanh.pop %v1905
    %1908 = vrot.lane.b32.xlu0 %v1906, 32
    %v1909 = vpop.permute.xlu0 %1908
    %v1911 = vmul.f32 %v1891, %v1909
    %v1913 = vrot.slane %v1911, 4
    %1914 = vrot.lane.b32.xlu0 %v1913, 80
    %v1915 = vpop.permute.xlu0 %1914
    %v1916 = vsel %vm49, %v1915, 0
    %1918 = vmatprep.subr.mxu0 0.0
    %1919 = vmatpush1.msra.mxu0 %v38
    %1920 = vmatprep.subr.mxu0 0.0
    %1921 = vmatpush1.msra.mxu0 %v39
    %1922 = vmatprep.subr.mxu0 0.0
    %1923 = vmatpush1.msra.mxu0 0.0
    %1924 = vmatprep.subr.mxu0 0.0
    %1925 = vmatpush1.msra.mxu0 0.0
    %1926 = vmatprep.subr.mxu0 0.0
    %1927 = vmatpush1.msra.mxu0 0.0
    %1928 = vmatprep.subr.mxu0 0.0
    %1929 = vmatpush1.msra.mxu0 0.0
    %1930 = vmatprep.subr.mxu0 0.0
    %1931 = vmatpush1.msra.mxu0 0.0
    %1932 = vmatprep.subr.mxu0 0.0
    %1933 = vmatpush1.msra.mxu0 0.0
    %1934 = vmatprep.subr.mxu0 0.0
    %1935 = vmatpush1.msra.mxu0 0.0
    %1936 = vmatprep.subr.mxu0 0.0
    %1937 = vmatpush1.msra.mxu0 0.0
    %1938 = vmatprep.subr.mxu0 0.0
    %1939 = vmatpush1.msra.mxu0 0.0
    %1940 = vmatprep.subr.mxu0 0.0
    %1941 = vmatpush1.msra.mxu0 0.0
    %1942 = vmatprep.subr.mxu0 0.0
    %1943 = vmatpush1.msra.mxu0 0.0
    %1944 = vmatprep.subr.mxu0 0.0
    %1945 = vmatpush1.msra.mxu0 0.0
    %1946 = vmatprep.subr.mxu0 0.0
    %1947 = vmatpush1.msra.mxu0 0.0
    %1948 = vmatprep.subr.mxu0 0.0
    %1949 = vmatpush1.msra.mxu0 0.0
    %1950 = vmatprep.subr.mxu0 0.0
    %1951 = vmatpush1.msra.mxu0 0.0
    %1952 = vmatprep.subr.mxu0 0.0
    %1953 = vmatpush1.msra.mxu0 0.0
    %1954 = vmatprep.subr.mxu0 0.0
    %1955 = vmatpush1.msra.mxu0 0.0
    %1956 = vmatprep.subr.mxu0 0.0
    %1957 = vmatpush1.msra.mxu0 0.0
    %1958 = vmatprep.subr.mxu0 0.0
    %1959 = vmatpush1.msra.mxu0 0.0
    %1960 = vmatprep.subr.mxu0 0.0
    %1961 = vmatpush1.msra.mxu0 0.0
    %1962 = vmatprep.subr.mxu0 0.0
    %1963 = vmatpush1.msra.mxu0 0.0
    %1964 = vmatprep.subr.mxu0 0.0
    %1965 = vmatpush1.msra.mxu0 0.0
    %1966 = vmatprep.subr.mxu0 0.0
    %1967 = vmatpush1.msra.mxu0 0.0
    %1968 = vmatprep.subr.mxu0 0.0
    %1969 = vmatpush1.msra.mxu0 0.0
    %1970 = vmatprep.subr.mxu0 0.0
    %1971 = vmatpush1.msra.mxu0 0.0
    %1972 = vmatprep.subr.mxu0 0.0
    %1973 = vmatpush1.msra.mxu0 0.0
    %1974 = vmatprep.subr.mxu0 0.0
    %1975 = vmatpush1.msra.mxu0 0.0
    %1976 = vmatprep.subr.mxu0 0.0
    %1977 = vmatpush1.msra.mxu0 0.0
    %1978 = vmatprep.subr.mxu0 0.0
    %1979 = vmatpush1.msra.mxu0 0.0
    %1980 = vmatprep.subr.mxu0 0.0
    %1981 = vmatpush1.msra.mxu0 0.0
    %1982 = vmatprep.mubr.f32.mxu0 0.0
    %1983 = vmatmul.mubr.f32.gmra.mrb[0].mxu0 %v1916
    %v1984 = vpop.f32.mrb[0].mxu0
    %v1985 = vadd.f32 0.0, %v1984
    %v1986 = vpop.f32.mrb[0].mxu0
    %1987 = vdwg.mxu0
    %v1989 = vrot.slane %v1985, 2
    %v1991 = vadd.f32 %v1158, %v1989
    %v1992 = vmul.f32 %v1991, %v30
    %v1993 = vxor.u32 %v1992, 2147483648
    %v1994 = vmul.f32 %v1993, 1.442695
    %v1995 = vpow.pop %v1994
    %v1996 = vadd.f32 %v1995, 1.0
    %v1997 = vrcp.pop %v1996
    %v1998 = vmul.f32 1.0, %v1997
    %v1999 = vmul.f32 %v1998, 2.0
    %v2000 = vsub.f32 %v1999, 1.0
    %v2001 = vsel %vm29, %v2000, %v1998
    %v2003 = vrot.slane %v1905, 6
    %v2005 = vmul.f32 %v2001, %v2003
    %2007 = vrot.lane.b32.xlu0 %v2001, 96
    %v2008 = vpop.permute.xlu0 %2007
    %v2010 = vmul.f32 %v2001, %v2008
    %2012 = vrot.lane.b32.xlu0 %v2010, 16
    %v2013 = vpop.permute.xlu0 %2012
    %v2015 = vadd.f32 %v2005, %v2013
    %v2016 = vtanh.pop %v2015
    %2018 = vrot.lane.b32.xlu0 %v2016, 32
    %v2019 = vpop.permute.xlu0 %2018
    %v2021 = vmul.f32 %v2001, %v2019
    %v2023 = vrot.slane %v2021, 6
    %2024 = vrot.lane.b32.xlu0 %v2023, 80
    %v2025 = vpop.permute.xlu0 %2024
    %v2028 = vsel %vm31, %v2025, %v1259
    %v2029 = vlaneseq
    %v2030 = vshrl.u32 %v2029, 7
    %v2031 = vsub.s32 2, %v2030
    %v2032 = vrot.slane %v42, %v2031
    %v2034 = vsel %vm49, %v2028, 0
    %2036 = vmatprep.subr.mxu0 0.0
    %2037 = vmatpush1.msra.mxu0 %v40
    %2038 = vmatprep.subr.mxu0 0.0
    %2039 = vmatpush1.msra.mxu0 %v41
    %2040 = vmatprep.subr.mxu0 0.0
    %2041 = vmatpush1.msra.mxu0 0.0
    %2042 = vmatprep.subr.mxu0 0.0
    %2043 = vmatpush1.msra.mxu0 0.0
    %2044 = vmatprep.subr.mxu0 0.0
    %2045 = vmatpush1.msra.mxu0 0.0
    %2046 = vmatprep.subr.mxu0 0.0
    %2047 = vmatpush1.msra.mxu0 0.0
    %2048 = vmatprep.subr.mxu0 0.0
    %2049 = vmatpush1.msra.mxu0 0.0
    %2050 = vmatprep.subr.mxu0 0.0
    %2051 = vmatpush1.msra.mxu0 0.0
    %2052 = vmatprep.subr.mxu0 0.0
    %2053 = vmatpush1.msra.mxu0 0.0
    %2054 = vmatprep.subr.mxu0 0.0
    %2055 = vmatpush1.msra.mxu0 0.0
    %2056 = vmatprep.subr.mxu0 0.0
    %2057 = vmatpush1.msra.mxu0 0.0
    %2058 = vmatprep.subr.mxu0 0.0
    %2059 = vmatpush1.msra.mxu0 0.0
    %2060 = vmatprep.subr.mxu0 0.0
    %2061 = vmatpush1.msra.mxu0 0.0
    %2062 = vmatprep.subr.mxu0 0.0
    %2063 = vmatpush1.msra.mxu0 0.0
    %2064 = vmatprep.subr.mxu0 0.0
    %2065 = vmatpush1.msra.mxu0 0.0
    %2066 = vmatprep.subr.mxu0 0.0
    %2067 = vmatpush1.msra.mxu0 0.0
    %2068 = vmatprep.subr.mxu0 0.0
    %2069 = vmatpush1.msra.mxu0 0.0
    %2070 = vmatprep.subr.mxu0 0.0
    %2071 = vmatpush1.msra.mxu0 0.0
    %2072 = vmatprep.subr.mxu0 0.0
    %2073 = vmatpush1.msra.mxu0 0.0
    %2074 = vmatprep.subr.mxu0 0.0
    %2075 = vmatpush1.msra.mxu0 0.0
    %2076 = vmatprep.subr.mxu0 0.0
    %2077 = vmatpush1.msra.mxu0 0.0
    %2078 = vmatprep.subr.mxu0 0.0
    %2079 = vmatpush1.msra.mxu0 0.0
    %2080 = vmatprep.subr.mxu0 0.0
    %2081 = vmatpush1.msra.mxu0 0.0
    %2082 = vmatprep.subr.mxu0 0.0
    %2083 = vmatpush1.msra.mxu0 0.0
    %2084 = vmatprep.subr.mxu0 0.0
    %2085 = vmatpush1.msra.mxu0 0.0
    %2086 = vmatprep.subr.mxu0 0.0
    %2087 = vmatpush1.msra.mxu0 0.0
    %2088 = vmatprep.subr.mxu0 0.0
    %2089 = vmatpush1.msra.mxu0 0.0
    %2090 = vmatprep.subr.mxu0 0.0
    %2091 = vmatpush1.msra.mxu0 0.0
    %2092 = vmatprep.subr.mxu0 0.0
    %2093 = vmatpush1.msra.mxu0 0.0
    %2094 = vmatprep.subr.mxu0 0.0
    %2095 = vmatpush1.msra.mxu0 0.0
    %2096 = vmatprep.subr.mxu0 0.0
    %2097 = vmatpush1.msra.mxu0 0.0
    %2098 = vmatprep.subr.mxu0 0.0
    %2099 = vmatpush1.msra.mxu0 0.0
    %2100 = vmatprep.mubr.f32.mxu0 0.0
    %2101 = vmatmul.mubr.f32.gmra.mrb[0].mxu0 %v2034
    %v2102 = vpop.f32.mrb[0].mxu0
    %v2103 = vadd.f32 %v2032, %v2102
    %v2104 = vpop.f32.mrb[0].mxu0
    %2105 = vdwg.mxu0
    %vm2106 = vcmask 33792
    %2107 = vst.msk [vmem:[#allocation2] sm:$0x3] %vm2106, %v2103
    // Predicated region
    $region10: #{bilstm_forward.1} parent=1 // pred_check
      _
    $region11: #{bilstm_forward.1} parent=1 // pred_check_branch
      %2109 = sbr.rel (0) target = $region13
    $region12: #{bilstm_forward.1} parent=1 // pred_region
      %s2111 = ssub.s32 32, 32
      %2112 = vsyncadd [#allocation3], %s2111
      %s2114 = sshll.u32 [#allocation2], 4
      %s2115 = int_to_ptr.vmem [resolvable:$true] %s2114
      %2117 = dma.vmem_to_hbm [thread:$0]  %s2115, 32, %s2, [#allocation3]
    $region13: #{bilstm_forward.1} parent=1 // pred_fallthru
      _
    // Predicated region
    $region14: #{bilstm_forward.1} parent=1 // pred_check
      _
    $region15: #{bilstm_forward.1} parent=1 // pred_check_branch
      %2119 = sbr.rel (0) target = $region17
    $region16: #{bilstm_forward.1} parent=1 // pred_region
      %2120 = dma.done [#allocation3], 32
    $region17: #{bilstm_forward.1} parent=1 // pred_fallthru
      _
    %2121 = vsyncpa [#allocation3], 1

</llo_original>
